<compile_context>
chip_gen: v7x
topology: tpu7x:2x2x1
jax: 0.10.0
libtpu: 0.0.40
codegen_flags: <defaults>
</compile_context>

<pallas_src>
import numpy as np
import jax
import jax.numpy as jnp
from jax import lax
from jax.experimental import pallas as pl
from jax.experimental.pallas import tpu as pltpu

_MXU_DTYPE = jnp.bfloat16      # MXU operand dtype (accumulation is always f32)


def _dot(a, b, ca, cb):
    """2-D dot_general contracting a-axis `ca` with b-axis `cb`, f32 accumulation."""
    return lax.dot_general(a, b, (((ca,), (cb,)), ((), ())),
                           preferred_element_type=jnp.float32)


# --------------------------------------------------------------------------- #
# Kernel 1: per-batch-tile spectral energy (f32 for threshold consistency).
# --------------------------------------------------------------------------- #
def _energy_kernel(x_ref, cos_ref, sin_ref, e_ref):
    tb, c, n = x_ref.shape
    f = cos_ref.shape[0]
    x_rows = x_ref[...].reshape(tb * c, n).astype(jnp.float32)    # free reshape
    fr = _dot(x_rows, cos_ref[...], 1, 1)                         # (tb*C, F)
    fi = _dot(x_rows, sin_ref[...], 1, 1)
    sq = fr * fr + fi * fi
    e_ref[...] = sq.reshape(tb, c, f).sum(axis=1, keepdims=True)  # (tb, 1, F)


# --------------------------------------------------------------------------- #
# Kernel 2: fused rFFT + spectral K/V + complex attention + softmax + context +
# adaptive high-freq mask + irFFT, emitting the (C, N) output layout directly.
# --------------------------------------------------------------------------- #
def _main_kernel(x_ref, wkv_ref, bkv_ref, cos_ref, sin_ref, ck_ref, ne_ref,
                 wh_ref, thr_ref, o_ref):
    tb, c, n = x_ref.shape
    f = cos_ref.shape[0]
    mxu = wkv_ref.dtype
    scale = float(c) ** -0.5

    wkv = wkv_ref[...]                     # (2C, C)  fused [Wk; Wv], bf16
    bkv = bkv_ref[...]                     # (2C, 1)  fused [bk; bv] * sqrt(N)
    cosm = cos_ref[...]                    # (F, N)   Re of ortho rDFT matrix
    sinm = sin_ref[...]                    # (F, N)   Im of ortho rDFT matrix
    ck = ck_ref[...]                       # (1, F)   irFFT fold weights (2 / 1)
    wh = wh_ref[...]                       # (C, 2)
    whr = wh[:, 0:1]                       # (C, 1)   Re(complex_weight_high)
    whi = wh[:, 1:2]                       # (C, 1)   Im(complex_weight_high)
    thr = thr_ref[0]                       # scalar threshold from SMEM

    # Batch-folded forward rDFT of x only (fc_K / fc_V are applied spectrally
    # below).  Channels on sublanes, frequencies on lanes throughout.
    x_rows = x_ref[...].reshape(tb * c, n).astype(mxu)            # free reshape
    frT = _dot(x_rows, cosm, 1, 1)                                # (tb*C, F) f32
    fiT = _dot(x_rows, sinm, 1, 1)                                # (tb*C, F) f32

    # rfft (ortho) of the constant bias lands on the DC bin only: bk*sqrt(N).
    dc = (lax.broadcasted_iota(jnp.int32, (1, f), 1) == 0).astype(jnp.float32)

    for b in range(tb):
        qrT = frT[b * c:(b + 1) * c, :]                           # (C, F) = Qr^T
        qiT = fiT[b * c:(b + 1) * c, :]                           # (C, F) = Qi^T

        # fc_K / fc_V in the frequency domain: K = rfft(x) @ Wk^T (+ DC bias).
        kvrT = _dot(wkv, qrT.astype(mxu), 1, 0) + bkv * dc        # (2C, F) f32
        kviT = _dot(wkv, qiT.astype(mxu), 1, 0)                   # (2C, F) f32
        krT, vrT = kvrT[:c], kvrT[c:]
        kiT, viT = kviT[:c], kviT[c:]

        # Complex attention packed as 2C-deep real contractions; all concats
        # are along sublanes (cheap), never lanes.
        q_cat = jnp.concatenate([qrT, qiT], axis=0).astype(mxu)        # (2C, F)
        kr_cat = jnp.concatenate([krT, -kiT], axis=0).astype(mxu)      # (2C, F)
        ki_cat = jnp.concatenate([kiT, krT], axis=0).astype(mxu)       # (2C, F)
        ar = _dot(q_cat, kr_cat, 0, 0) * scale                         # (F, F)
        ai = _dot(q_cat, ki_cat, 0, 0) * scale
        mag = jnp.sqrt(ar * ar + ai * ai)

        # softmax over |attention| (f32 VPU math, EUP approximate reciprocal).
        # TODO(synk): for large N (>~1k) stream this flash-style over the key
        # axis instead of materialising (F, F) f32 intermediates.
        m = jnp.max(mag, axis=-1, keepdims=True)
        p = jnp.exp(mag - m)
        attn = p * pl.reciprocal(jnp.sum(p, axis=-1, keepdims=True), approx=True)

        # Transposed context directly (no (F,C)->(C,F) transposes):
        #   ctx^T (2C, F_q) = [Vr; Vi]^T (2C, F_k) @ attn^T (F_k, F_q)
        v_cat = jnp.concatenate([vrT, viT], axis=0).astype(mxu)        # (2C, F)
        ctxT = _dot(v_cat, attn.astype(mxu), 1, 1)                     # (2C, F)
        ctx_rT, ctx_iT = ctxT[:c], ctxT[c:]

        # Adaptive high-frequency mask + complex weight, in the (C, F) layout.
        mask = (ne_ref[b] > thr).astype(jnp.float32)                   # (1, F)
        mrT = qrT * mask
        miT = qiT * mask
        ctx_rT = ctx_rT + mrT * whr - miT * whi
        ctx_iT = ctx_iT + mrT * whi + miT * whr

        # Ortho irFFT reusing the forward cos/sin matrices: fold ck on the VPU,
        # then two (C,F)x(F,N) matmuls give the (C, N) output layout directly.
        out = (_dot((ctx_rT * ck).astype(mxu), cosm, 1, 0) +
               _dot((ctx_iT * ck).astype(mxu), sinm, 1, 0))            # (C, N)
        o_ref[b] = out.astype(o_ref.dtype)


# --------------------------------------------------------------------------- #
# Ortho-normalized real DFT operators (trace-time numpy constants).
# --------------------------------------------------------------------------- #
def _dft_matrices(n):
    f = n // 2 + 1
    k = np.arange(f, dtype=np.float64)[:, None]
    t = np.arange(n, dtype=np.float64)[None, :]
    ang = 2.0 * np.pi * k * t / n
    s = 1.0 / np.sqrt(n)
    fwd_cos = (np.cos(ang) * s).astype(np.float32)     # (F, N) Re of rfft matrix
    fwd_sin = (-np.sin(ang) * s).astype(np.float32)    # (F, N) Im of rfft matrix
    ck = np.full((1, f), 2.0, dtype=np.float32)        # irfft: x = ck*(Xr cos + Xi sin)
    ck[0, 0] = 1.0
    if n % 2 == 0:
        ck[0, -1] = 1.0
    return fwd_cos, fwd_sin, ck


def _tpu_config():
    """(mxu_lane_target, min_grid_steps, vmem_limit_bytes) for the local TPU."""
    try:
        kind = jax.devices()[0].device_kind.lower()
    except Exception:
        kind = ""
    mib = 1024 * 1024
    if "v7" in kind:                    # 2 TensorCores / chip, 64 MiB VMEM/core
        return 256, 2, 48 * mib
    if "v6" in kind:                    # 1 TC, 128 MiB VMEM, 256x256 MXU
        return 256, 1, 96 * mib
    if "v5" in kind or "v4" in kind:    # 128x128 MXU, 128 MiB VMEM
        return 128, 1, 96 * mib
    return 256, 1, 48 * mib             # unknown generation: conservative VMEM


def _pick_batch_tile(batch, channels, n, lane_target, min_steps, vmem_limit):
    """Fold batches per grid step to fill the MXU (C*tb rows toward the MXU
    tile), while (a) keeping the f32 spectrum slab + per-batch (F,F) softmax
    intermediates well under the scoped VMEM limit, (b) keeping >= min_steps
    grid steps (both v7x TensorCores get work) and (c) tb | batch."""
    f = n // 2 + 1
    tb = min(batch, max(1, pl.cdiv(lane_target, channels)))

    def vmem_est(t):
        slab = 2 * t * channels * f * 4                     # frT / fiT (f32)
        io = 2 * 2 * t * channels * n * 4                   # x / out blocks
        attn = 4 * f * f * 4                                # ar/ai/mag/p (f32)
        consts = 2 * f * n * 2 + 4 * channels * channels    # cos/sin bf16, wkv
        return slab + io + attn + consts

    while tb > 1 and vmem_est(tb) > vmem_limit // 2:
        tb -= 1
    while tb > 1 and (batch % tb != 0 or batch // tb < min_steps):
        tb -= 1
    return tb


# --------------------------------------------------------------------------- #
# Wrapper (forward pass of Adaptive_Spectral_Block_t)
# --------------------------------------------------------------------------- #
@jax.jit
def adaptive_spectral_block_t(x_bcn, wk, bk, wv, bv, w_high, threshold_param):
    B, C, N = x_bcn.shape
    F = N // 2 + 1
    in_dtype = x_bcn.dtype
    lane_target, min_steps, vmem_limit = _tpu_config()
    tb = _pick_batch_tile(B, C, N, lane_target, min_steps, vmem_limit)
    grid = (B // tb,)

    fwd_cos, fwd_sin, ck = _dft_matrices(N)
    cos_f32 = jnp.asarray(fwd_cos)
    sin_f32 = jnp.asarray(fwd_sin)
    cos_mxu = cos_f32.astype(_MXU_DTYPE)
    sin_mxu = sin_f32.astype(_MXU_DTYPE)
    ck_row = jnp.asarray(ck)                                       # (1, F) f32

    wkv = jnp.concatenate([wk, wv], axis=0).astype(_MXU_DTYPE)     # (2C, C)
    # rfft (ortho) of the constant bias is bk*sqrt(N) on the DC bin only.
    bkv = (jnp.concatenate([bk, bv], axis=0) * float(np.sqrt(N))
           ).reshape(2 * C, 1).astype(jnp.float32)
    wh = w_high.astype(jnp.float32)                                # (C, 2)

    # Grid-invariant operands: single-buffered (halves their VMEM footprint).
    const = lambda shape: pl.BlockSpec(shape, lambda b: (0, 0),
                                       pipeline_mode=pl.Buffered(1))
    perb = lambda shape: pl.BlockSpec(shape, lambda b: (b, 0, 0))

    # ---- kernel 1: spectral energy only (F on lanes) --------------------------
    energy = pl.pallas_call(
        _energy_kernel,
        grid=grid,
        in_specs=[perb((tb, C, N)), const((F, N)), const((F, N))],
        out_specs=perb((tb, 1, F)),
        out_shape=jax.ShapeDtypeStruct((B, 1, F), jnp.float32),
        compiler_params=pltpu.CompilerParams(
            dimension_semantics=("parallel",), vmem_limit_bytes=vmem_limit),
    )(x_bcn, cos_f32, sin_f32)[:, 0, :]                            # (B, F)

    # TODO(synk): torch.median / torch.quantile are sort-based; no clean Pallas
    # TPU equivalent, so this tiny (B, F) threshold computation stays in JAX.
    med = jnp.sort(energy, axis=1)[:, (F - 1) // 2]                # lower median
    norm_e = energy / (med[:, None] + 1e-6)                        # (B, F)
    thr = jnp.quantile(norm_e, jnp.asarray(threshold_param, jnp.float32))
    thr1 = thr.reshape(1).astype(jnp.float32)                      # SMEM scalar
    ne3 = norm_e.reshape(B, 1, F).astype(jnp.float32)

    # ---- kernel 2: fused rFFT + spectral K/V + attention + mask + irFFT -------
    # NOTE: for very large N the (F, N) DFT operands and the (F, F) softmax
    # intermediates should additionally be tiled over N / the key axis to stay
    # inside v7x's 64 MiB VMEM; not needed at these shapes.
    out = pl.pallas_call(
        _main_kernel,
        grid=grid,
        in_specs=[perb((tb, C, N)),
                  const((2 * C, C)), const((2 * C, 1)),
                  const((F, N)), const((F, N)), const((1, F)),
                  perb((tb, 1, F)),
                  const((C, 2)),
                  pl.BlockSpec(memory_space=pltpu.MemorySpace.SMEM)],
        out_specs=perb((tb, C, N)),
        out_shape=jax.ShapeDtypeStruct((B, C, N), in_dtype),
        compiler_params=pltpu.CompilerParams(
            dimension_semantics=("parallel",), vmem_limit_bytes=vmem_limit),
    )(x_bcn, wkv, bkv, cos_mxu, sin_mxu, ck_row, ne3, wh, thr1)
    return out                                                     # (B, C, N)


# --------------------------------------------------------------------------- #
# Pure-JAX reference (jnp.fft) for a sanity check
# --------------------------------------------------------------------------- #
def _reference(x_bcn, wk, bk, wv, bv, w_high, threshold_param):
    x = jnp.transpose(x_bcn, (0, 2, 1)).astype(jnp.float32)
    B, N, C = x.shape
    x_fft = jnp.fft.rfft(x, axis=1, norm="ortho")
    K = jnp.fft.rfft(x @ wk.T + bk, axis=1, norm="ortho")
    V = jnp.fft.rfft(x @ wv.T + bv, axis=1, norm="ortho")
    scale = C ** -0.5
    attn = jnp.einsum("bfc,bgc->bfg", x_fft, K) * scale
    attn = jax.nn.softmax(jnp.abs(attn), axis=-1).astype(jnp.complex64)
    ctx = jnp.einsum("bfg,bgc->bfc", attn, V)
    energy = jnp.sum(jnp.abs(x_fft) ** 2, axis=-1)
    Fdim = energy.shape[1]
    med = jnp.sort(energy, axis=1)[:, (Fdim - 1) // 2][:, None]
    norm_e = energy / (med + 1e-6)
    thr = jnp.quantile(norm_e, threshold_param)
    mask = (norm_e > thr).astype(jnp.float32)[:, :, None]
    wh = w_high[:, 0] + 1j * w_high[:, 1]
    ctx = ctx + x_fft * mask * wh
    out = jnp.fft.irfft(ctx, n=N, axis=1, norm="ortho")
    return jnp.transpose(out, (0, 2, 1)).astype(x_bcn.dtype)


if __name__ == "__main__":
    B, C, N = 2, 32, 16       # batch, dim (channels), sequence length
    key = jax.random.PRNGKey(0)
    kx, k1, k2, k3, k4, k5, k6 = jax.random.split(key, 7)

    x = jax.random.normal(kx, (B, C, N), dtype=jnp.float32)
    # deterministic synthetic parameters (shapes per the module __init__);
    # fc_Q, fc and complex_weight are unused by the reference forward pass.
    wk = jax.random.normal(k1, (C, C), dtype=jnp.float32) * 0.02     # fc_K.weight
    bk = jax.random.normal(k2, (C,), dtype=jnp.float32) * 0.02       # fc_K.bias
    wv = jax.random.normal(k3, (C, C), dtype=jnp.float32) * 0.02     # fc_V.weight
    bv = jax.random.normal(k4, (C,), dtype=jnp.float32) * 0.02       # fc_V.bias
    w_high = jax.random.normal(k5, (C, 2), dtype=jnp.float32) * 0.02 # complex_weight_high
    threshold_param = float(jax.random.uniform(k6, (), minval=0.0, maxval=0.5))

    out = adaptive_spectral_block_t(x, wk, bk, wv, bv, w_high, threshold_param)
    out = jax.block_until_ready(out)

    ref = _reference(x, wk, bk, wv, bv, w_high, threshold_param)
    err = float(jnp.max(jnp.abs(out - ref)))
    assert out.shape == (B, C, N), out.shape
    # bf16 MXU operands with f32 accumulation vs. an all-f32 jnp.fft reference:
    # allow ~1e-2 absolute slack (structural bugs show up well above this).
    assert err < 1e-2, f"max abs err {err}"
    print("KERNEL_OK")
</pallas_src>

<mosaic_0001>
module attributes {stable_mosaic.version = 11 : i64} {
  func.func @_energy_kernel(%arg0: i32, %arg1: memref<2x32x16xf32, #tpu.memory_space<vmem>>, %arg2: memref<9x16xf32, #tpu.memory_space<vmem>>, %arg3: memref<9x16xf32, #tpu.memory_space<vmem>>, %arg4: memref<2x1x9xf32, #tpu.memory_space<vmem>>) attributes {dimension_semantics = [#tpu.dimension_semantics<parallel>], iteration_bounds = array<i64: 1>, scalar_prefetch = 0 : i64, scratch_operands = 0 : i64, tpu.core_type = #tpu.core_type<tc>, window_params = [{transform_indices = @transform_0, window_bounds = array<i64: 2, 32, 16>}, {pipeline_mode = #tpu.pipeline_mode<synchronous>, transform_indices = @transform_1, window_bounds = array<i64: 9, 16>}, {pipeline_mode = #tpu.pipeline_mode<synchronous>, transform_indices = @transform_2, window_bounds = array<i64: 9, 16>}, {transform_indices = @transform_3, window_bounds = array<i64: 2, 1, 9>}]} {
    %c0 = arith.constant 0 : index
    %c0_0 = arith.constant 0 : index
    %c0_1 = arith.constant 0 : index
    %0 = vector.load %arg1[%c0, %c0_0, %c0_1] : memref<2x32x16xf32, #tpu.memory_space<vmem>>, vector<2x32x16xf32>
    %1 = vector.shape_cast %0 : vector<2x32x16xf32> to vector<64x16xf32>
    %c0_2 = arith.constant 0 : index
    %c0_3 = arith.constant 0 : index
    %2 = vector.load %arg2[%c0_2, %c0_3] : memref<9x16xf32, #tpu.memory_space<vmem>>, vector<9x16xf32>
    %cst = arith.constant dense<0.000000e+00> : vector<64x9xf32>
    %3 = tpu.matmul %1, %2, %cst {dimension_numbers = #tpu.dot_dimension_numbers<[1], [1], [0], [0], [0, 0, 1, 0], [], []>} : vector<64x16xf32>, vector<9x16xf32>, vector<64x9xf32> -> vector<64x9xf32>
    %c0_4 = arith.constant 0 : index
    %c0_5 = arith.constant 0 : index
    %4 = vector.load %arg3[%c0_4, %c0_5] : memref<9x16xf32, #tpu.memory_space<vmem>>, vector<9x16xf32>
    %cst_6 = arith.constant dense<0.000000e+00> : vector<64x9xf32>
    %5 = tpu.matmul %1, %4, %cst_6 {dimension_numbers = #tpu.dot_dimension_numbers<[1], [1], [0], [0], [0, 0, 1, 0], [], []>} : vector<64x16xf32>, vector<9x16xf32>, vector<64x9xf32> -> vector<64x9xf32>
    %6 = arith.mulf %3, %3 : vector<64x9xf32>
    %7 = arith.mulf %5, %5 : vector<64x9xf32>
    %8 = arith.addf %6, %7 : vector<64x9xf32>
    %9 = vector.shape_cast %8 : vector<64x9xf32> to vector<2x32x9xf32>
    %cst_7 = arith.constant dense<0.000000e+00> : vector<2x9xf32>
    %10 = vector.multi_reduction <add>, %9, %cst_7 [1] : vector<2x32x9xf32> to vector<2x9xf32>
    %11 = vector.shape_cast %10 : vector<2x9xf32> to vector<2x1x9xf32>
    %c0_8 = arith.constant 0 : index
    %c0_9 = arith.constant 0 : index
    %c0_10 = arith.constant 0 : index
    %12 = vector.load %arg4[%c0_8, %c0_9, %c0_10] : memref<2x1x9xf32, #tpu.memory_space<vmem>>, vector<2x1x9xf32>
    tpu.vector_store %arg4[%c0_8, %c0_9, %c0_10], %11 {strides = array<i32>} : memref<2x1x9xf32, #tpu.memory_space<vmem>>, vector<2x1x9xf32>,
    return
  }
  func.func @transform_0(%arg0: i32) -> (i32, i32, i32) {
    %c0_i32 = arith.constant 0 : i32
    %c0_i32_0 = arith.constant 0 : i32
    %c0_i32_1 = arith.constant 0 : i32
    return %arg0, %c0_i32, %c0_i32_0 : i32, i32, i32
  }
  func.func @transform_1(%arg0: i32) -> (i32, i32) {
    %c0_i32 = arith.constant 0 : i32
    %c0_i32_0 = arith.constant 0 : i32
    %c0_i32_1 = arith.constant 0 : i32
    return %c0_i32, %c0_i32_0 : i32, i32
  }
  func.func @transform_2(%arg0: i32) -> (i32, i32) {
    %c0_i32 = arith.constant 0 : i32
    %c0_i32_0 = arith.constant 0 : i32
    %c0_i32_1 = arith.constant 0 : i32
    return %c0_i32, %c0_i32_0 : i32, i32
  }
  func.func @transform_3(%arg0: i32) -> (i32, i32, i32) {
    %c0_i32 = arith.constant 0 : i32
    %c0_i32_0 = arith.constant 0 : i32
    %c0_i32_1 = arith.constant 0 : i32
    return %arg0, %c0_i32, %c0_i32_0 : i32, i32, i32
  }
}

module attributes {stable_mosaic.version = 11 : i64} {
  func.func @_main_kernel(%arg0: i32, %arg1: memref<2x32x16xf32, #tpu.memory_space<vmem>>, %arg2: memref<64x32xbf16, #tpu.memory_space<vmem>>, %arg3: memref<64x1xf32, #tpu.memory_space<vmem>>, %arg4: memref<9x16xbf16, #tpu.memory_space<vmem>>, %arg5: memref<9x16xbf16, #tpu.memory_space<vmem>>, %arg6: memref<1x9xf32, #tpu.memory_space<vmem>>, %arg7: memref<2x1x9xf32, #tpu.memory_space<vmem>>, %arg8: memref<32x2xf32, #tpu.memory_space<vmem>>, %arg9: memref<1xf32, #tpu.memory_space<smem>>, %arg10: memref<2x32x16xf32, #tpu.memory_space<vmem>>) attributes {dimension_semantics = [#tpu.dimension_semantics<parallel>], iteration_bounds = array<i64: 1>, scalar_prefetch = 0 : i64, scratch_operands = 0 : i64, tpu.core_type = #tpu.core_type<tc>, window_params = [{transform_indices = @transform_0, window_bounds = array<i64: 2, 32, 16>}, {pipeline_mode = #tpu.pipeline_mode<synchronous>, transform_indices = @transform_1, window_bounds = array<i64: 64, 32>}, {pipeline_mode = #tpu.pipeline_mode<synchronous>, transform_indices = @transform_2, window_bounds = array<i64: 64, 1>}, {pipeline_mode = #tpu.pipeline_mode<synchronous>, transform_indices = @transform_3, window_bounds = array<i64: 9, 16>}, {pipeline_mode = #tpu.pipeline_mode<synchronous>, transform_indices = @transform_4, window_bounds = array<i64: 9, 16>}, {pipeline_mode = #tpu.pipeline_mode<synchronous>, transform_indices = @transform_5, window_bounds = array<i64: 1, 9>}, {transform_indices = @transform_6, window_bounds = array<i64: 2, 1, 9>}, {pipeline_mode = #tpu.pipeline_mode<synchronous>, transform_indices = @transform_7, window_bounds = array<i64: 32, 2>}, {transform_indices = @transform_8, window_bounds = array<i64: 1>}, {transform_indices = @transform_9, window_bounds = array<i64: 2, 32, 16>}]} {
    %c0 = arith.constant 0 : index
    %c0_0 = arith.constant 0 : index
    %0 = vector.load %arg2[%c0, %c0_0] : memref<64x32xbf16, #tpu.memory_space<vmem>>, vector<64x32xbf16>
    %c0_1 = arith.constant 0 : index
    %c0_2 = arith.constant 0 : index
    %1 = vector.load %arg3[%c0_1, %c0_2] : memref<64x1xf32, #tpu.memory_space<vmem>>, vector<64x1xf32>
    %c0_3 = arith.constant 0 : index
    %c0_4 = arith.constant 0 : index
    %2 = vector.load %arg4[%c0_3, %c0_4] : memref<9x16xbf16, #tpu.memory_space<vmem>>, vector<9x16xbf16>
    %c0_5 = arith.constant 0 : index
    %c0_6 = arith.constant 0 : index
    %3 = vector.load %arg5[%c0_5, %c0_6] : memref<9x16xbf16, #tpu.memory_space<vmem>>, vector<9x16xbf16>
    %c0_7 = arith.constant 0 : index
    %c0_8 = arith.constant 0 : index
    %4 = vector.load %arg6[%c0_7, %c0_8] : memref<1x9xf32, #tpu.memory_space<vmem>>, vector<1x9xf32>
    %c0_9 = arith.constant 0 : index
    %c0_10 = arith.constant 0 : index
    %5 = vector.load %arg8[%c0_9, %c0_10] : memref<32x2xf32, #tpu.memory_space<vmem>>, vector<32x2xf32>
    %6 = vector.extract_strided_slice %5 {offsets = [0, 0], sizes = [32, 1], strides = [1, 1]} : vector<32x2xf32> to vector<32x1xf32>
    %7 = vector.extract_strided_slice %5 {offsets = [0, 1], sizes = [32, 1], strides = [1, 1]} : vector<32x2xf32> to vector<32x1xf32>
    %c0_11 = arith.constant 0 : index
    %8 = memref.load %arg9[%c0_11] : memref<1xf32, #tpu.memory_space<smem>>
    %c0_12 = arith.constant 0 : index
    %c0_13 = arith.constant 0 : index
    %c0_14 = arith.constant 0 : index
    %9 = vector.load %arg1[%c0_12, %c0_13, %c0_14] : memref<2x32x16xf32, #tpu.memory_space<vmem>>, vector<2x32x16xf32>
    %10 = vector.shape_cast %9 : vector<2x32x16xf32> to vector<64x16xf32>
    %11 = arith.truncf %10 : vector<64x16xf32> to vector<64x16xbf16>
    %cst = arith.constant dense<0.000000e+00> : vector<64x9xf32>
    %12 = tpu.matmul %11, %2, %cst {dimension_numbers = #tpu.dot_dimension_numbers<[1], [1], [0], [0], [0, 0, 1, 0], [], []>} : vector<64x16xbf16>, vector<9x16xbf16>, vector<64x9xf32> -> vector<64x9xf32>
    %cst_15 = arith.constant dense<0.000000e+00> : vector<64x9xf32>
    %13 = tpu.matmul %11, %3, %cst_15 {dimension_numbers = #tpu.dot_dimension_numbers<[1], [1], [0], [0], [0, 0, 1, 0], [], []>} : vector<64x16xbf16>, vector<9x16xbf16>, vector<64x9xf32> -> vector<64x9xf32>
    %14 = tpu.iota {dimensions = array<i32: 1>} : vector<1x9xi32>
    %c0_i32 = arith.constant 0 : i32
    %15 = vector.broadcast %c0_i32 : i32 to vector<1x9xi32>
    %16 = arith.cmpi eq, %14, %15 : vector<1x9xi32>
    %17 = arith.extui %16 : vector<1x9xi1> to vector<1x9xi32>
    %18 = arith.sitofp %17 : vector<1x9xi32> to vector<1x9xf32>
    %19 = vector.extract_strided_slice %12 {offsets = [0, 0], sizes = [32, 9], strides = [1, 1]} : vector<64x9xf32> to vector<32x9xf32>
    %20 = vector.extract_strided_slice %13 {offsets = [0, 0], sizes = [32, 9], strides = [1, 1]} : vector<64x9xf32> to vector<32x9xf32>
    %21 = arith.truncf %19 : vector<32x9xf32> to vector<32x9xbf16>
    %cst_16 = arith.constant dense<0.000000e+00> : vector<64x9xf32>
    %22 = tpu.matmul %0, %21, %cst_16 {dimension_numbers = #tpu.dot_dimension_numbers<[1], [0], [0], [1], [0, 0, 1, 1], [], []>} : vector<64x32xbf16>, vector<32x9xbf16>, vector<64x9xf32> -> vector<64x9xf32>
    %23 = vector.broadcast %1 : vector<64x1xf32> to vector<64x9xf32>
    %24 = vector.broadcast %18 : vector<1x9xf32> to vector<64x9xf32>
    %25 = arith.mulf %23, %24 : vector<64x9xf32>
    %26 = arith.addf %22, %25 : vector<64x9xf32>
    %27 = arith.truncf %20 : vector<32x9xf32> to vector<32x9xbf16>
    %cst_17 = arith.constant dense<0.000000e+00> : vector<64x9xf32>
    %28 = tpu.matmul %0, %27, %cst_17 {dimension_numbers = #tpu.dot_dimension_numbers<[1], [0], [0], [1], [0, 0, 1, 1], [], []>} : vector<64x32xbf16>, vector<32x9xbf16>, vector<64x9xf32> -> vector<64x9xf32>
    %29 = vector.extract_strided_slice %26 {offsets = [0, 0], sizes = [32, 9], strides = [1, 1]} : vector<64x9xf32> to vector<32x9xf32>
    %30 = vector.extract_strided_slice %26 {offsets = [32, 0], sizes = [32, 9], strides = [1, 1]} : vector<64x9xf32> to vector<32x9xf32>
    %31 = vector.extract_strided_slice %28 {offsets = [0, 0], sizes = [32, 9], strides = [1, 1]} : vector<64x9xf32> to vector<32x9xf32>
    %32 = vector.extract_strided_slice %28 {offsets = [32, 0], sizes = [32, 9], strides = [1, 1]} : vector<64x9xf32> to vector<32x9xf32>
    %33 = tpu.concatenate %19, %20 in 0 : vector<32x9xf32>, vector<32x9xf32> -> vector<64x9xf32>
    %34 = arith.truncf %33 : vector<64x9xf32> to vector<64x9xbf16>
    %cst_18 = arith.constant 0.000000e+00 : f32
    %35 = vector.broadcast %cst_18 : f32 to vector<32x9xf32>
    %36 = arith.subf %35, %31 : vector<32x9xf32>
    %37 = tpu.concatenate %29, %36 in 0 : vector<32x9xf32>, vector<32x9xf32> -> vector<64x9xf32>
    %38 = arith.truncf %37 : vector<64x9xf32> to vector<64x9xbf16>
    %39 = tpu.concatenate %31, %29 in 0 : vector<32x9xf32>, vector<32x9xf32> -> vector<64x9xf32>
    %40 = arith.truncf %39 : vector<64x9xf32> to vector<64x9xbf16>
    %cst_19 = arith.constant dense<0.000000e+00> : vector<9x9xf32>
    %41 = tpu.matmul %34, %38, %cst_19 {dimension_numbers = #tpu.dot_dimension_numbers<[0], [0], [1], [1], [0, 1, 1, 1], [], []>} : vector<64x9xbf16>, vector<64x9xbf16>, vector<9x9xf32> -> vector<9x9xf32>
    %cst_20 = arith.constant 0.176776692 : f32
    %42 = vector.broadcast %cst_20 : f32 to vector<9x9xf32>
    %43 = arith.mulf %41, %42 : vector<9x9xf32>
    %cst_21 = arith.constant dense<0.000000e+00> : vector<9x9xf32>
    %44 = tpu.matmul %34, %40, %cst_21 {dimension_numbers = #tpu.dot_dimension_numbers<[0], [0], [1], [1], [0, 1, 1, 1], [], []>} : vector<64x9xbf16>, vector<64x9xbf16>, vector<9x9xf32> -> vector<9x9xf32>
    %cst_22 = arith.constant 0.176776692 : f32
    %45 = vector.broadcast %cst_22 : f32 to vector<9x9xf32>
    %46 = arith.mulf %44, %45 : vector<9x9xf32>
    %47 = arith.mulf %43, %43 : vector<9x9xf32>
    %48 = arith.mulf %46, %46 : vector<9x9xf32>
    %49 = arith.addf %47, %48 : vector<9x9xf32>
    %50 = math.sqrt %49 : vector<9x9xf32>
    %cst_23 = arith.constant dense<0xFF800000> : vector<9xf32>
    %51 = vector.multi_reduction <maximumf>, %50, %cst_23 [1] : vector<9x9xf32> to vector<9xf32>
    %52 = vector.shape_cast %51 : vector<9xf32> to vector<9x1xf32>
    %53 = vector.broadcast %52 : vector<9x1xf32> to vector<9x9xf32>
    %54 = arith.subf %50, %53 : vector<9x9xf32>
    %55 = math.exp %54 : vector<9x9xf32>
    %cst_24 = arith.constant dense<0.000000e+00> : vector<9xf32>
    %56 = vector.multi_reduction <add>, %55, %cst_24 [1] : vector<9x9xf32> to vector<9xf32>
    %57 = vector.shape_cast %56 : vector<9xf32> to vector<9x1xf32>
    %58 = tpu.reciprocal %57 {approx = true} : vector<9x1xf32> -> vector<9x1xf32>
    %59 = vector.broadcast %58 : vector<9x1xf32> to vector<9x9xf32>
    %60 = arith.mulf %55, %59 : vector<9x9xf32>
    %61 = tpu.concatenate %30, %32 in 0 : vector<32x9xf32>, vector<32x9xf32> -> vector<64x9xf32>
    %62 = arith.truncf %61 : vector<64x9xf32> to vector<64x9xbf16>
    %63 = arith.truncf %60 : vector<9x9xf32> to vector<9x9xbf16>
    %cst_25 = arith.constant dense<0.000000e+00> : vector<64x9xf32>
    %64 = tpu.matmul %62, %63, %cst_25 {dimension_numbers = #tpu.dot_dimension_numbers<[1], [1], [0], [0], [0, 0, 1, 0], [], []>} : vector<64x9xbf16>, vector<9x9xbf16>, vector<64x9xf32> -> vector<64x9xf32>
    %65 = vector.extract_strided_slice %64 {offsets = [0, 0], sizes = [32, 9], strides = [1, 1]} : vector<64x9xf32> to vector<32x9xf32>
    %66 = vector.extract_strided_slice %64 {offsets = [32, 0], sizes = [32, 9], strides = [1, 1]} : vector<64x9xf32> to vector<32x9xf32>
    %c0_26 = arith.constant 0 : index
    %c0_27 = arith.constant 0 : index
    %c0_28 = arith.constant 0 : index
    %67 = vector.load %arg7[%c0_26, %c0_27, %c0_28] : memref<2x1x9xf32, #tpu.memory_space<vmem>>, vector<1x1x9xf32>
    %68 = vector.shape_cast %67 : vector<1x1x9xf32> to vector<1x9xf32>
    %69 = vector.broadcast %8 : f32 to vector<1x9xf32>
    %70 = arith.cmpf ogt, %68, %69 : vector<1x9xf32>
    %71 = arith.extui %70 : vector<1x9xi1> to vector<1x9xi32>
    %72 = arith.sitofp %71 : vector<1x9xi32> to vector<1x9xf32>
    %73 = vector.broadcast %72 : vector<1x9xf32> to vector<32x9xf32>
    %74 = arith.mulf %19, %73 : vector<32x9xf32>
    %75 = vector.broadcast %72 : vector<1x9xf32> to vector<32x9xf32>
    %76 = arith.mulf %20, %75 : vector<32x9xf32>
    %77 = vector.broadcast %6 : vector<32x1xf32> to vector<32x9xf32>
    %78 = arith.mulf %74, %77 : vector<32x9xf32>
    %79 = arith.addf %65, %78 : vector<32x9xf32>
    %80 = vector.broadcast %7 : vector<32x1xf32> to vector<32x9xf32>
    %81 = arith.mulf %76, %80 : vector<32x9xf32>
    %82 = arith.subf %79, %81 : vector<32x9xf32>
    %83 = vector.broadcast %7 : vector<32x1xf32> to vector<32x9xf32>
    %84 = arith.mulf %74, %83 : vector<32x9xf32>
    %85 = arith.addf %66, %84 : vector<32x9xf32>
    %86 = vector.broadcast %6 : vector<32x1xf32> to vector<32x9xf32>
    %87 = arith.mulf %76, %86 : vector<32x9xf32>
    %88 = arith.addf %85, %87 : vector<32x9xf32>
    %89 = vector.broadcast %4 : vector<1x9xf32> to vector<32x9xf32>
    %90 = arith.mulf %82, %89 : vector<32x9xf32>
    %91 = arith.truncf %90 : vector<32x9xf32> to vector<32x9xbf16>
    %cst_29 = arith.constant dense<0.000000e+00> : vector<32x16xf32>
    %92 = tpu.matmul %91, %2, %cst_29 {dimension_numbers = #tpu.dot_dimension_numbers<[1], [0], [0], [1], [0, 0, 1, 1], [], []>} : vector<32x9xbf16>, vector<9x16xbf16>, vector<32x16xf32> -> vector<32x16xf32>
    %93 = vector.broadcast %4 : vector<1x9xf32> to vector<32x9xf32>
    %94 = arith.mulf %88, %93 : vector<32x9xf32>
    %95 = arith.truncf %94 : vector<32x9xf32> to vector<32x9xbf16>
    %cst_30 = arith.constant dense<0.000000e+00> : vector<32x16xf32>
    %96 = tpu.matmul %95, %3, %cst_30 {dimension_numbers = #tpu.dot_dimension_numbers<[1], [0], [0], [1], [0, 0, 1, 1], [], []>} : vector<32x9xbf16>, vector<9x16xbf16>, vector<32x16xf32> -> vector<32x16xf32>
    %97 = arith.addf %92, %96 : vector<32x16xf32>
    %c0_31 = arith.constant 0 : index
    %c0_32 = arith.constant 0 : index
    %c0_33 = arith.constant 0 : index
    %98 = vector.load %arg10[%c0_31, %c0_32, %c0_33] : memref<2x32x16xf32, #tpu.memory_space<vmem>>, vector<1x32x16xf32>
    %99 = vector.shape_cast %98 : vector<1x32x16xf32> to vector<32x16xf32>
    %100 = vector.shape_cast %97 : vector<32x16xf32> to vector<1x32x16xf32>
    tpu.vector_store %arg10[%c0_31, %c0_32, %c0_33], %100 {strides = array<i32>} : memref<2x32x16xf32, #tpu.memory_space<vmem>>, vector<1x32x16xf32>,
    %101 = vector.extract_strided_slice %12 {offsets = [32, 0], sizes = [32, 9], strides = [1, 1]} : vector<64x9xf32> to vector<32x9xf32>
    %102 = vector.extract_strided_slice %13 {offsets = [32, 0], sizes = [32, 9], strides = [1, 1]} : vector<64x9xf32> to vector<32x9xf32>
    %103 = arith.truncf %101 : vector<32x9xf32> to vector<32x9xbf16>
    %cst_34 = arith.constant dense<0.000000e+00> : vector<64x9xf32>
    %104 = tpu.matmul %0, %103, %cst_34 {dimension_numbers = #tpu.dot_dimension_numbers<[1], [0], [0], [1], [0, 0, 1, 1], [], []>} : vector<64x32xbf16>, vector<32x9xbf16>, vector<64x9xf32> -> vector<64x9xf32>
    %105 = vector.broadcast %1 : vector<64x1xf32> to vector<64x9xf32>
    %106 = vector.broadcast %18 : vector<1x9xf32> to vector<64x9xf32>
    %107 = arith.mulf %105, %106 : vector<64x9xf32>
    %108 = arith.addf %104, %107 : vector<64x9xf32>
    %109 = arith.truncf %102 : vector<32x9xf32> to vector<32x9xbf16>
    %cst_35 = arith.constant dense<0.000000e+00> : vector<64x9xf32>
    %110 = tpu.matmul %0, %109, %cst_35 {dimension_numbers = #tpu.dot_dimension_numbers<[1], [0], [0], [1], [0, 0, 1, 1], [], []>} : vector<64x32xbf16>, vector<32x9xbf16>, vector<64x9xf32> -> vector<64x9xf32>
    %111 = vector.extract_strided_slice %108 {offsets = [0, 0], sizes = [32, 9], strides = [1, 1]} : vector<64x9xf32> to vector<32x9xf32>
    %112 = vector.extract_strided_slice %108 {offsets = [32, 0], sizes = [32, 9], strides = [1, 1]} : vector<64x9xf32> to vector<32x9xf32>
    %113 = vector.extract_strided_slice %110 {offsets = [0, 0], sizes = [32, 9], strides = [1, 1]} : vector<64x9xf32> to vector<32x9xf32>
    %114 = vector.extract_strided_slice %110 {offsets = [32, 0], sizes = [32, 9], strides = [1, 1]} : vector<64x9xf32> to vector<32x9xf32>
    %115 = tpu.concatenate %101, %102 in 0 : vector<32x9xf32>, vector<32x9xf32> -> vector<64x9xf32>
    %116 = arith.truncf %115 : vector<64x9xf32> to vector<64x9xbf16>
    %cst_36 = arith.constant 0.000000e+00 : f32
    %117 = vector.broadcast %cst_36 : f32 to vector<32x9xf32>
    %118 = arith.subf %117, %113 : vector<32x9xf32>
    %119 = tpu.concatenate %111, %118 in 0 : vector<32x9xf32>, vector<32x9xf32> -> vector<64x9xf32>
    %120 = arith.truncf %119 : vector<64x9xf32> to vector<64x9xbf16>
    %121 = tpu.concatenate %113, %111 in 0 : vector<32x9xf32>, vector<32x9xf32> -> vector<64x9xf32>
    %122 = arith.truncf %121 : vector<64x9xf32> to vector<64x9xbf16>
    %cst_37 = arith.constant dense<0.000000e+00> : vector<9x9xf32>
    %123 = tpu.matmul %116, %120, %cst_37 {dimension_numbers = #tpu.dot_dimension_numbers<[0], [0], [1], [1], [0, 1, 1, 1], [], []>} : vector<64x9xbf16>, vector<64x9xbf16>, vector<9x9xf32> -> vector<9x9xf32>
    %cst_38 = arith.constant 0.176776692 : f32
    %124 = vector.broadcast %cst_38 : f32 to vector<9x9xf32>
    %125 = arith.mulf %123, %124 : vector<9x9xf32>
    %cst_39 = arith.constant dense<0.000000e+00> : vector<9x9xf32>
    %126 = tpu.matmul %116, %122, %cst_39 {dimension_numbers = #tpu.dot_dimension_numbers<[0], [0], [1], [1], [0, 1, 1, 1], [], []>} : vector<64x9xbf16>, vector<64x9xbf16>, vector<9x9xf32> -> vector<9x9xf32>
    %cst_40 = arith.constant 0.176776692 : f32
    %127 = vector.broadcast %cst_40 : f32 to vector<9x9xf32>
    %128 = arith.mulf %126, %127 : vector<9x9xf32>
    %129 = arith.mulf %125, %125 : vector<9x9xf32>
    %130 = arith.mulf %128, %128 : vector<9x9xf32>
    %131 = arith.addf %129, %130 : vector<9x9xf32>
    %132 = math.sqrt %131 : vector<9x9xf32>
    %cst_41 = arith.constant dense<0xFF800000> : vector<9xf32>
    %133 = vector.multi_reduction <maximumf>, %132, %cst_41 [1] : vector<9x9xf32> to vector<9xf32>
    %134 = vector.shape_cast %133 : vector<9xf32> to vector<9x1xf32>
    %135 = vector.broadcast %134 : vector<9x1xf32> to vector<9x9xf32>
    %136 = arith.subf %132, %135 : vector<9x9xf32>
    %137 = math.exp %136 : vector<9x9xf32>
    %cst_42 = arith.constant dense<0.000000e+00> : vector<9xf32>
    %138 = vector.multi_reduction <add>, %137, %cst_42 [1] : vector<9x9xf32> to vector<9xf32>
    %139 = vector.shape_cast %138 : vector<9xf32> to vector<9x1xf32>
    %140 = tpu.reciprocal %139 {approx = true} : vector<9x1xf32> -> vector<9x1xf32>
    %141 = vector.broadcast %140 : vector<9x1xf32> to vector<9x9xf32>
    %142 = arith.mulf %137, %141 : vector<9x9xf32>
    %143 = tpu.concatenate %112, %114 in 0 : vector<32x9xf32>, vector<32x9xf32> -> vector<64x9xf32>
    %144 = arith.truncf %143 : vector<64x9xf32> to vector<64x9xbf16>
    %145 = arith.truncf %142 : vector<9x9xf32> to vector<9x9xbf16>
    %cst_43 = arith.constant dense<0.000000e+00> : vector<64x9xf32>
    %146 = tpu.matmul %144, %145, %cst_43 {dimension_numbers = #tpu.dot_dimension_numbers<[1], [1], [0], [0], [0, 0, 1, 0], [], []>} : vector<64x9xbf16>, vector<9x9xbf16>, vector<64x9xf32> -> vector<64x9xf32>
    %147 = vector.extract_strided_slice %146 {offsets = [0, 0], sizes = [32, 9], strides = [1, 1]} : vector<64x9xf32> to vector<32x9xf32>
    %148 = vector.extract_strided_slice %146 {offsets = [32, 0], sizes = [32, 9], strides = [1, 1]} : vector<64x9xf32> to vector<32x9xf32>
    %c1 = arith.constant 1 : index
    %c0_44 = arith.constant 0 : index
    %c0_45 = arith.constant 0 : index
    %149 = vector.load %arg7[%c1, %c0_44, %c0_45] : memref<2x1x9xf32, #tpu.memory_space<vmem>>, vector<1x1x9xf32>
    %150 = vector.shape_cast %149 : vector<1x1x9xf32> to vector<1x9xf32>
    %151 = vector.broadcast %8 : f32 to vector<1x9xf32>
    %152 = arith.cmpf ogt, %150, %151 : vector<1x9xf32>
    %153 = arith.extui %152 : vector<1x9xi1> to vector<1x9xi32>
    %154 = arith.sitofp %153 : vector<1x9xi32> to vector<1x9xf32>
    %155 = vector.broadcast %154 : vector<1x9xf32> to vector<32x9xf32>
    %156 = arith.mulf %101, %155 : vector<32x9xf32>
    %157 = vector.broadcast %154 : vector<1x9xf32> to vector<32x9xf32>
    %158 = arith.mulf %102, %157 : vector<32x9xf32>
    %159 = vector.broadcast %6 : vector<32x1xf32> to vector<32x9xf32>
    %160 = arith.mulf %156, %159 : vector<32x9xf32>
    %161 = arith.addf %147, %160 : vector<32x9xf32>
    %162 = vector.broadcast %7 : vector<32x1xf32> to vector<32x9xf32>
    %163 = arith.mulf %158, %162 : vector<32x9xf32>
    %164 = arith.subf %161, %163 : vector<32x9xf32>
    %165 = vector.broadcast %7 : vector<32x1xf32> to vector<32x9xf32>
    %166 = arith.mulf %156, %165 : vector<32x9xf32>
    %167 = arith.addf %148, %166 : vector<32x9xf32>
    %168 = vector.broadcast %6 : vector<32x1xf32> to vector<32x9xf32>
    %169 = arith.mulf %158, %168 : vector<32x9xf32>
    %170 = arith.addf %167, %169 : vector<32x9xf32>
    %171 = vector.broadcast %4 : vector<1x9xf32> to vector<32x9xf32>
    %172 = arith.mulf %164, %171 : vector<32x9xf32>
    %173 = arith.truncf %172 : vector<32x9xf32> to vector<32x9xbf16>
    %cst_46 = arith.constant dense<0.000000e+00> : vector<32x16xf32>
    %174 = tpu.matmul %173, %2, %cst_46 {dimension_numbers = #tpu.dot_dimension_numbers<[1], [0], [0], [1], [0, 0, 1, 1], [], []>} : vector<32x9xbf16>, vector<9x16xbf16>, vector<32x16xf32> -> vector<32x16xf32>
    %175 = vector.broadcast %4 : vector<1x9xf32> to vector<32x9xf32>
    %176 = arith.mulf %170, %175 : vector<32x9xf32>
    %177 = arith.truncf %176 : vector<32x9xf32> to vector<32x9xbf16>
    %cst_47 = arith.constant dense<0.000000e+00> : vector<32x16xf32>
    %178 = tpu.matmul %177, %3, %cst_47 {dimension_numbers = #tpu.dot_dimension_numbers<[1], [0], [0], [1], [0, 0, 1, 1], [], []>} : vector<32x9xbf16>, vector<9x16xbf16>, vector<32x16xf32> -> vector<32x16xf32>
    %179 = arith.addf %174, %178 : vector<32x16xf32>
    %c1_48 = arith.constant 1 : index
    %c0_49 = arith.constant 0 : index
    %c0_50 = arith.constant 0 : index
    %180 = vector.load %arg10[%c1_48, %c0_49, %c0_50] : memref<2x32x16xf32, #tpu.memory_space<vmem>>, vector<1x32x16xf32>
    %181 = vector.shape_cast %180 : vector<1x32x16xf32> to vector<32x16xf32>
    %182 = vector.shape_cast %179 : vector<32x16xf32> to vector<1x32x16xf32>
    tpu.vector_store %arg10[%c1_48, %c0_49, %c0_50], %182 {strides = array<i32>} : memref<2x32x16xf32, #tpu.memory_space<vmem>>, vector<1x32x16xf32>,
    return
  }
  func.func @transform_0(%arg0: i32) -> (i32, i32, i32) {
    %c0_i32 = arith.constant 0 : i32
    %c0_i32_0 = arith.constant 0 : i32
    %c0_i32_1 = arith.constant 0 : i32
    return %arg0, %c0_i32, %c0_i32_0 : i32, i32, i32
  }
  func.func @transform_1(%arg0: i32) -> (i32, i32) {
    %c0_i32 = arith.constant 0 : i32
    %c0_i32_0 = arith.constant 0 : i32
    %c0_i32_1 = arith.constant 0 : i32
    return %c0_i32, %c0_i32_0 : i32, i32
  }
  func.func @transform_2(%arg0: i32) -> (i32, i32) {
    %c0_i32 = arith.constant 0 : i32
    %c0_i32_0 = arith.constant 0 : i32
    %c0_i32_1 = arith.constant 0 : i32
    return %c0_i32, %c0_i32_0 : i32, i32
  }
  func.func @transform_3(%arg0: i32) -> (i32, i32) {
    %c0_i32 = arith.constant 0 : i32
    %c0_i32_0 = arith.constant 0 : i32
    %c0_i32_1 = arith.constant 0 : i32
    return %c0_i32, %c0_i32_0 : i32, i32
  }
  func.func @transform_4(%arg0: i32) -> (i32, i32) {
    %c0_i32 = arith.constant 0 : i32
    %c0_i32_0 = arith.constant 0 : i32
    %c0_i32_1 = arith.constant 0 : i32
    return %c0_i32, %c0_i32_0 : i32, i32
  }
  func.func @transform_5(%arg0: i32) -> (i32, i32) {
    %c0_i32 = arith.constant 0 : i32
    %c0_i32_0 = arith.constant 0 : i32
    %c0_i32_1 = arith.constant 0 : i32
    return %c0_i32, %c0_i32_0 : i32, i32
  }
  func.func @transform_6(%arg0: i32) -> (i32, i32, i32) {
    %c0_i32 = arith.constant 0 : i32
    %c0_i32_0 = arith.constant 0 : i32
    %c0_i32_1 = arith.constant 0 : i32
    return %arg0, %c0_i32, %c0_i32_0 : i32, i32, i32
  }
  func.func @transform_7(%arg0: i32) -> (i32, i32) {
    %c0_i32 = arith.constant 0 : i32
    %c0_i32_0 = arith.constant 0 : i32
    %c0_i32_1 = arith.constant 0 : i32
    return %c0_i32, %c0_i32_0 : i32, i32
  }
  func.func @transform_8(%arg0: i32) -> i32 {
    %c0_i32 = arith.constant 0 : i32
    %c0_i32_0 = arith.constant 0 : i32
    return %c0_i32 : i32
  }
  func.func @transform_9(%arg0: i32) -> (i32, i32, i32) {
    %c0_i32 = arith.constant 0 : i32
    %c0_i32_0 = arith.constant 0 : i32
    %c0_i32_1 = arith.constant 0 : i32
    return %arg0, %c0_i32, %c0_i32_0 : i32, i32, i32
  }
}

</mosaic_0001>

<llo_original>
// kernel: adaptive_spectral_block_t.2
$region0: #{adaptive_spectral_block_t.2}
  #allocation0 [shape = 'u32[]', space=smem, size = 0x4, offset = 0x4, fixed_abs, tag = 'smem constant byte address 0x4 - core index']
  #allocation1 [shape = 'u32[144,128]{1,0:T(1,128)}', space=vmem, size = 0x12000, scoped, tag = 'internal scratch']
  %s0 = inlined_call_operand.vmem [shape: f32[2,32,16], index: 0, kind: input, shape index: {}]
  %s1 = inlined_call_operand.vmem [shape: f32[9,16], index: 1, kind: input, shape index: {}]
  %s2 = inlined_call_operand.vmem [shape: f32[9,16], index: 2, kind: input, shape index: {}]
  %s3 = inlined_call_operand.vmem [shape: f32[2,1,9], index: 3, kind: output, shape index: {}]
  %s4 = sld [smem:[#allocation0]]
  $region22: #{adaptive_spectral_block_t.2} parent=0
    _
  %s6 = ssub.s32 1, %s4
  %s7 = scalar_select 0, %s6, %s4
  // Predicated region
  $region2: #{adaptive_spectral_block_t.2} parent=0 // pred_check
    _
  $region3: #{adaptive_spectral_block_t.2} parent=0 // pred_check_branch
    %9 = sbr.rel (0) target = $region5
  $region4: #{adaptive_spectral_block_t.2} parent=0 // pred_region
    _
  $region5: #{adaptive_spectral_block_t.2} parent=0 // pred_fallthru
    _
  // Predicated region
  $region6: #{adaptive_spectral_block_t.2} parent=0 // pred_check
    _
  $region7: #{adaptive_spectral_block_t.2} parent=0 // pred_check_branch
    %11 = sbr.rel (0) target = $region9
  $region8: #{adaptive_spectral_block_t.2} parent=0 // pred_region
    _
  $region9: #{adaptive_spectral_block_t.2} parent=0 // pred_fallthru
    _
  // Predicated region
  $region10: #{adaptive_spectral_block_t.2} parent=0 // pred_check
    _
  $region11: #{adaptive_spectral_block_t.2} parent=0 // pred_check_branch
    %13 = sbr.rel (0) target = $region13
  $region12: #{adaptive_spectral_block_t.2} parent=0 // pred_region
    _
  $region13: #{adaptive_spectral_block_t.2} parent=0 // pred_fallthru
    _
  %v14 = vld [vmem:[%s0] sm:$0xff]
  %v15 = vld [vmem:[%s0 + $0x8] sm:$0xff]
  %v16 = vld [vmem:[%s0 + $0x10] sm:$0xff]
  %v17 = vld [vmem:[%s0 + $0x18] sm:$0xff]
  %v18 = vld [vmem:[%s0 + $0x20] sm:$0xff]
  %v19 = vld [vmem:[%s0 + $0x28] sm:$0xff]
  %v20 = vld [vmem:[%s0 + $0x30] sm:$0xff]
  %v21 = vld [vmem:[%s0 + $0x38] sm:$0xff]
  %v22 = vld [vmem:[%s1] sm:$0xff]
  %v23 = vld [vmem:[%s1 + $0x8] sm:$0x1]
  %vm24 = vcmask 130048
  %v26 = vsel %vm24, %v14, 0
  %v29 = vsel %vm24, %v15, 0
  %v32 = vsel %vm24, %v16, 0
  %v35 = vsel %vm24, %v17, 0
  %v38 = vsel %vm24, %v18, 0
  %v41 = vsel %vm24, %v19, 0
  %v44 = vsel %vm24, %v20, 0
  %v47 = vsel %vm24, %v21, 0
  %v50 = vsel %vm24, %v22, 0
  %v53 = vsel %vm24, %v23, 0
  %55 = vmatprep.subr.mxu0 0.0
  %56 = vmatpush1.xpose.msra.mxu0 %v50
  %57 = vmatprep.subr.mxu0 0.0
  %58 = vmatpush1.xpose.msra.mxu0 %v53
  %59 = vmatprep.subr.mxu0 0.0
  %60 = vmatpush1.xpose.msra.mxu0 0.0
  %61 = vmatprep.subr.mxu0 0.0
  %62 = vmatpush1.xpose.msra.mxu0 0.0
  %63 = vmatprep.subr.mxu0 0.0
  %64 = vmatpush1.xpose.msra.mxu0 0.0
  %65 = vmatprep.subr.mxu0 0.0
  %66 = vmatpush1.xpose.msra.mxu0 0.0
  %67 = vmatprep.subr.mxu0 0.0
  %68 = vmatpush1.xpose.msra.mxu0 0.0
  %69 = vmatprep.subr.mxu0 0.0
  %70 = vmatpush1.xpose.msra.mxu0 0.0
  %71 = vmatprep.subr.mxu0 0.0
  %72 = vmatpush1.xpose.msra.mxu0 0.0
  %73 = vmatprep.subr.mxu0 0.0
  %74 = vmatpush1.xpose.msra.mxu0 0.0
  %75 = vmatprep.subr.mxu0 0.0
  %76 = vmatpush1.xpose.msra.mxu0 0.0
  %77 = vmatprep.subr.mxu0 0.0
  %78 = vmatpush1.xpose.msra.mxu0 0.0
  %79 = vmatprep.subr.mxu0 0.0
  %80 = vmatpush1.xpose.msra.mxu0 0.0
  %81 = vmatprep.subr.mxu0 0.0
  %82 = vmatpush1.xpose.msra.mxu0 0.0
  %83 = vmatprep.subr.mxu0 0.0
  %84 = vmatpush1.xpose.msra.mxu0 0.0
  %85 = vmatprep.subr.mxu0 0.0
  %86 = vmatpush1.xpose.msra.mxu0 0.0
  %87 = vmatprep.subr.mxu0 0.0
  %88 = vmatpush1.xpose.msra.mxu0 0.0
  %89 = vmatprep.subr.mxu0 0.0
  %90 = vmatpush1.xpose.msra.mxu0 0.0
  %91 = vmatprep.subr.mxu0 0.0
  %92 = vmatpush1.xpose.msra.mxu0 0.0
  %93 = vmatprep.subr.mxu0 0.0
  %94 = vmatpush1.xpose.msra.mxu0 0.0
  %95 = vmatprep.subr.mxu0 0.0
  %96 = vmatpush1.xpose.msra.mxu0 0.0
  %97 = vmatprep.subr.mxu0 0.0
  %98 = vmatpush1.xpose.msra.mxu0 0.0
  %99 = vmatprep.subr.mxu0 0.0
  %100 = vmatpush1.xpose.msra.mxu0 0.0
  %101 = vmatprep.subr.mxu0 0.0
  %102 = vmatpush1.xpose.msra.mxu0 0.0
  %103 = vmatprep.subr.mxu0 0.0
  %104 = vmatpush1.xpose.msra.mxu0 0.0
  %105 = vmatprep.subr.mxu0 0.0
  %106 = vmatpush1.xpose.msra.mxu0 0.0
  %107 = vmatprep.subr.mxu0 0.0
  %108 = vmatpush1.xpose.msra.mxu0 0.0
  %109 = vmatprep.subr.mxu0 0.0
  %110 = vmatpush1.xpose.msra.mxu0 0.0
  %111 = vmatprep.subr.mxu0 0.0
  %112 = vmatpush1.xpose.msra.mxu0 0.0
  %113 = vmatprep.subr.mxu0 0.0
  %114 = vmatpush1.xpose.msra.mxu0 0.0
  %115 = vmatprep.subr.mxu0 0.0
  %116 = vmatpush1.xpose.msra.mxu0 0.0
  %117 = vmatprep.subr.mxu0 0.0
  %118 = vmatpush1.xpose.msra.mxu0 0.0
  %119 = vmatprep.mubr.f32.mxu0 0.0
  %120 = vmatmul.mubr.f32.gmra.mrb[0].mxu0 %v26
  %v121 = vpop.f32.mrb[0].mxu0
  %v122 = vadd.f32 0.0, %v121
  %v123 = vpop.f32.mrb[0].mxu0
  %124 = vmatprep.mubr.f32.mxu0 0.0
  %125 = vmatmul.mubr.f32.gmra.mrb[0].mxu0 %v29
  %v126 = vpop.f32.mrb[0].mxu0
  %v127 = vadd.f32 0.0, %v126
  %v128 = vpop.f32.mrb[0].mxu0
  %129 = vmatprep.mubr.f32.mxu0 0.0
  %130 = vmatmul.mubr.f32.gmra.mrb[0].mxu0 %v32
  %v131 = vpop.f32.mrb[0].mxu0
  %v132 = vadd.f32 0.0, %v131
  %v133 = vpop.f32.mrb[0].mxu0
  %134 = vmatprep.mubr.f32.mxu0 0.0
  %135 = vmatmul.mubr.f32.gmra.mrb[0].mxu0 %v35
  %v136 = vpop.f32.mrb[0].mxu0
  %v137 = vadd.f32 0.0, %v136
  %v138 = vpop.f32.mrb[0].mxu0
  %139 = vmatprep.mubr.f32.mxu0 0.0
  %140 = vmatmul.mubr.f32.gmra.mrb[0].mxu0 %v38
  %v141 = vpop.f32.mrb[0].mxu0
  %v142 = vadd.f32 0.0, %v141
  %v143 = vpop.f32.mrb[0].mxu0
  %144 = vmatprep.mubr.f32.mxu0 0.0
  %145 = vmatmul.mubr.f32.gmra.mrb[0].mxu0 %v41
  %v146 = vpop.f32.mrb[0].mxu0
  %v147 = vadd.f32 0.0, %v146
  %v148 = vpop.f32.mrb[0].mxu0
  %149 = vmatprep.mubr.f32.mxu0 0.0
  %150 = vmatmul.mubr.f32.gmra.mrb[0].mxu0 %v44
  %v151 = vpop.f32.mrb[0].mxu0
  %v152 = vadd.f32 0.0, %v151
  %v153 = vpop.f32.mrb[0].mxu0
  %154 = vmatprep.mubr.f32.mxu0 0.0
  %155 = vmatmul.mubr.f32.gmra.mrb[0].mxu0 %v47
  %v156 = vpop.f32.mrb[0].mxu0
  %v157 = vadd.f32 0.0, %v156
  %v158 = vpop.f32.mrb[0].mxu0
  %159 = vdwg.mxu0
  %v160 = vld [vmem:[%s2] sm:$0xff]
  %v161 = vld [vmem:[%s2 + $0x8] sm:$0x1]
  %v163 = vsel %vm24, %v160, 0
  %v166 = vsel %vm24, %v161, 0
  %168 = vmatprep.subr.mxu0 0.0
  %169 = vmatpush1.xpose.msra.mxu0 %v163
  %170 = vmatprep.subr.mxu0 0.0
  %171 = vmatpush1.xpose.msra.mxu0 %v166
  %172 = vmatprep.subr.mxu0 0.0
  %173 = vmatpush1.xpose.msra.mxu0 0.0
  %174 = vmatprep.subr.mxu0 0.0
  %175 = vmatpush1.xpose.msra.mxu0 0.0
  %176 = vmatprep.subr.mxu0 0.0
  %177 = vmatpush1.xpose.msra.mxu0 0.0
  %178 = vmatprep.subr.mxu0 0.0
  %179 = vmatpush1.xpose.msra.mxu0 0.0
  %180 = vmatprep.subr.mxu0 0.0
  %181 = vmatpush1.xpose.msra.mxu0 0.0
  %182 = vmatprep.subr.mxu0 0.0
  %183 = vmatpush1.xpose.msra.mxu0 0.0
  %184 = vmatprep.subr.mxu0 0.0
  %185 = vmatpush1.xpose.msra.mxu0 0.0
  %186 = vmatprep.subr.mxu0 0.0
  %187 = vmatpush1.xpose.msra.mxu0 0.0
  %188 = vmatprep.subr.mxu0 0.0
  %189 = vmatpush1.xpose.msra.mxu0 0.0
  %190 = vmatprep.subr.mxu0 0.0
  %191 = vmatpush1.xpose.msra.mxu0 0.0
  %192 = vmatprep.subr.mxu0 0.0
  %193 = vmatpush1.xpose.msra.mxu0 0.0
  %194 = vmatprep.subr.mxu0 0.0
  %195 = vmatpush1.xpose.msra.mxu0 0.0
  %196 = vmatprep.subr.mxu0 0.0
  %197 = vmatpush1.xpose.msra.mxu0 0.0
  %198 = vmatprep.subr.mxu0 0.0
  %199 = vmatpush1.xpose.msra.mxu0 0.0
  %200 = vmatprep.subr.mxu0 0.0
  %201 = vmatpush1.xpose.msra.mxu0 0.0
  %202 = vmatprep.subr.mxu0 0.0
  %203 = vmatpush1.xpose.msra.mxu0 0.0
  %204 = vmatprep.subr.mxu0 0.0
  %205 = vmatpush1.xpose.msra.mxu0 0.0
  %206 = vmatprep.subr.mxu0 0.0
  %207 = vmatpush1.xpose.msra.mxu0 0.0
  %208 = vmatprep.subr.mxu0 0.0
  %209 = vmatpush1.xpose.msra.mxu0 0.0
  %210 = vmatprep.subr.mxu0 0.0
  %211 = vmatpush1.xpose.msra.mxu0 0.0
  %212 = vmatprep.subr.mxu0 0.0
  %213 = vmatpush1.xpose.msra.mxu0 0.0
  %214 = vmatprep.subr.mxu0 0.0
  %215 = vmatpush1.xpose.msra.mxu0 0.0
  %216 = vmatprep.subr.mxu0 0.0
  %217 = vmatpush1.xpose.msra.mxu0 0.0
  %218 = vmatprep.subr.mxu0 0.0
  %219 = vmatpush1.xpose.msra.mxu0 0.0
  %220 = vmatprep.subr.mxu0 0.0
  %221 = vmatpush1.xpose.msra.mxu0 0.0
  %222 = vmatprep.subr.mxu0 0.0
  %223 = vmatpush1.xpose.msra.mxu0 0.0
  %224 = vmatprep.subr.mxu0 0.0
  %225 = vmatpush1.xpose.msra.mxu0 0.0
  %226 = vmatprep.subr.mxu0 0.0
  %227 = vmatpush1.xpose.msra.mxu0 0.0
  %228 = vmatprep.subr.mxu0 0.0
  %229 = vmatpush1.xpose.msra.mxu0 0.0
  %230 = vmatprep.subr.mxu0 0.0
  %231 = vmatpush1.xpose.msra.mxu0 0.0
  %232 = vmatprep.mubr.f32.mxu0 0.0
  %233 = vmatmul.mubr.f32.gmra.mrb[0].mxu0 %v26
  %v234 = vpop.f32.mrb[0].mxu0
  %v235 = vadd.f32 0.0, %v234
  %v236 = vpop.f32.mrb[0].mxu0
  %237 = vmatprep.mubr.f32.mxu0 0.0
  %238 = vmatmul.mubr.f32.gmra.mrb[0].mxu0 %v29
  %v239 = vpop.f32.mrb[0].mxu0
  %v240 = vadd.f32 0.0, %v239
  %v241 = vpop.f32.mrb[0].mxu0
  %242 = vmatprep.mubr.f32.mxu0 0.0
  %243 = vmatmul.mubr.f32.gmra.mrb[0].mxu0 %v32
  %v244 = vpop.f32.mrb[0].mxu0
  %v245 = vadd.f32 0.0, %v244
  %v246 = vpop.f32.mrb[0].mxu0
  %247 = vmatprep.mubr.f32.mxu0 0.0
  %248 = vmatmul.mubr.f32.gmra.mrb[0].mxu0 %v35
  %v249 = vpop.f32.mrb[0].mxu0
  %v250 = vadd.f32 0.0, %v249
  %v251 = vpop.f32.mrb[0].mxu0
  %252 = vmatprep.mubr.f32.mxu0 0.0
  %253 = vmatmul.mubr.f32.gmra.mrb[0].mxu0 %v38
  %v254 = vpop.f32.mrb[0].mxu0
  %v255 = vadd.f32 0.0, %v254
  %v256 = vpop.f32.mrb[0].mxu0
  %257 = vmatprep.mubr.f32.mxu0 0.0
  %258 = vmatmul.mubr.f32.gmra.mrb[0].mxu0 %v41
  %v259 = vpop.f32.mrb[0].mxu0
  %v260 = vadd.f32 0.0, %v259
  %v261 = vpop.f32.mrb[0].mxu0
  %262 = vmatprep.mubr.f32.mxu0 0.0
  %263 = vmatmul.mubr.f32.gmra.mrb[0].mxu0 %v44
  %v264 = vpop.f32.mrb[0].mxu0
  %v265 = vadd.f32 0.0, %v264
  %v266 = vpop.f32.mrb[0].mxu0
  %267 = vmatprep.mubr.f32.mxu0 0.0
  %268 = vmatmul.mubr.f32.gmra.mrb[0].mxu0 %v47
  %v269 = vpop.f32.mrb[0].mxu0
  %v270 = vadd.f32 0.0, %v269
  %v271 = vpop.f32.mrb[0].mxu0
  %272 = vdwg.mxu0
  %v273 = vmul.f32 %v122, %v122
  %v274 = vmul.f32 %v127, %v127
  %v275 = vmul.f32 %v132, %v132
  %v276 = vmul.f32 %v137, %v137
  %v277 = vmul.f32 %v142, %v142
  %v278 = vmul.f32 %v147, %v147
  %v279 = vmul.f32 %v152, %v152
  %v280 = vmul.f32 %v157, %v157
  %v281 = vmul.f32 %v235, %v235
  %v282 = vmul.f32 %v240, %v240
  %v283 = vmul.f32 %v245, %v245
  %v284 = vmul.f32 %v250, %v250
  %v285 = vmul.f32 %v255, %v255
  %v286 = vmul.f32 %v260, %v260
  %v287 = vmul.f32 %v265, %v265
  %v288 = vmul.f32 %v270, %v270
  %v289 = vadd.f32 %v273, %v281
  %v290 = vadd.f32 %v274, %v282
  %v291 = vadd.f32 %v275, %v283
  %v292 = vadd.f32 %v276, %v284
  %v293 = vadd.f32 %v277, %v285
  %v294 = vadd.f32 %v278, %v286
  %v295 = vadd.f32 %v279, %v287
  %v296 = vadd.f32 %v280, %v288
  %vm297 = vcmask 72704
  %v298 = vsel %vm297, %v289, 0.0
  %v299 = vsel %vm297, %v290, 0.0
  %v300 = vadd.f32 %v298, %v299
  %v301 = vsel %vm297, %v291, 0.0
  %v302 = vadd.f32 %v300, %v301
  %v303 = vsel %vm297, %v292, 0.0
  %v304 = vadd.f32 %v302, %v303
  %v305 = vrot.slane %v304, 4
  %v306 = vadd.f32 %v304, %v305
  %v307 = vrot.slane %v306, 2
  %v308 = vadd.f32 %v306, %v307
  %v309 = vrot.slane %v308, 1
  %v310 = vadd.f32 %v308, %v309
  %v311 = vsel %vm297, %v293, 0.0
  %v312 = vsel %vm297, %v294, 0.0
  %v313 = vadd.f32 %v311, %v312
  %v314 = vsel %vm297, %v295, 0.0
  %v315 = vadd.f32 %v313, %v314
  %v316 = vsel %vm297, %v296, 0.0
  %v317 = vadd.f32 %v315, %v316
  %v318 = vrot.slane %v317, 4
  %v319 = vadd.f32 %v317, %v318
  %v320 = vrot.slane %v319, 2
  %v321 = vadd.f32 %v319, %v320
  %v322 = vrot.slane %v321, 1
  %v323 = vadd.f32 %v321, %v322
  %vm324 = vcmask 65536
  %325 = vst.msk [vmem:[%s3] sm:$0x1] %vm324, %v310
  %326 = vst.msk [vmem:[%s3 + $0x1] sm:$0x1] %vm324, %v323
  // Predicated region
  $region14: #{adaptive_spectral_block_t.2} parent=0 // pred_check
    _
  $region15: #{adaptive_spectral_block_t.2} parent=0 // pred_check_branch
    %328 = sbr.rel (0) target = $region17
  $region16: #{adaptive_spectral_block_t.2} parent=0 // pred_region
    _
  $region17: #{adaptive_spectral_block_t.2} parent=0 // pred_fallthru
    _
  // Predicated region
  $region18: #{adaptive_spectral_block_t.2} parent=0 // pred_check
    _
  $region19: #{adaptive_spectral_block_t.2} parent=0 // pred_check_branch
    %330 = sbr.rel (0) target = $region21
  $region20: #{adaptive_spectral_block_t.2} parent=0 // pred_region
    _
  $region21: #{adaptive_spectral_block_t.2} parent=0 // pred_fallthru
    _

// kernel: adaptive_spectral_block_t.3
$region0: #{adaptive_spectral_block_t.3}
  #allocation0 [shape = 'u32[]', space=smem, size = 0x4, offset = 0x4, fixed_abs, tag = 'smem constant byte address 0x4 - core index']
  #allocation1 [shape = 'u32[144,128]{1,0:T(1,128)}', space=vmem, size = 0x12000, scoped, tag = 'internal scratch']
  #allocation2 [shape = 'f32[1]{0:T(128)S(6)}', space=smem, size = 0x200, scoped, tag = 'scoped memory for adaptive_spectral_block_t.3']
  %s0 = inlined_call_operand.vmem [shape: f32[2,32,16], index: 0, kind: input, shape index: {}]
  %s1 = inlined_call_operand.vmem [shape: bf16[64,32], index: 1, kind: input, shape index: {}]
  %s2 = inlined_call_operand.vmem [shape: f32[64,1], index: 2, kind: input, shape index: {}]
  %s3 = inlined_call_operand.vmem [shape: bf16[9,16], index: 3, kind: input, shape index: {}]
  %s4 = inlined_call_operand.vmem [shape: bf16[9,16], index: 4, kind: input, shape index: {}]
  %s5 = inlined_call_operand.vmem [shape: f32[1,9], index: 5, kind: input, shape index: {}]
  %s6 = inlined_call_operand.vmem [shape: f32[2,1,9], index: 6, kind: input, shape index: {}]
  %s7 = inlined_call_operand.vmem [shape: f32[32,2], index: 7, kind: input, shape index: {}]
  %s8 = inlined_call_operand.<no memory space> [shape: f32[1], index: 8, kind: input, shape index: {}]
  %s9 = inlined_call_operand.vmem [shape: f32[2,32,16], index: 9, kind: output, shape index: {}]
  %s10 = sld [smem:[#allocation0]]
  $region46: #{adaptive_spectral_block_t.3} parent=0
    _
  %s12 = ssub.s32 1, %s10
  %s13 = scalar_select 0, %s12, %s10
  %14 = sst [smem:[#allocation2]] %s8
  // Predicated region
  $region2: #{adaptive_spectral_block_t.3} parent=0 // pred_check
    _
  $region3: #{adaptive_spectral_block_t.3} parent=0 // pred_check_branch
    %16 = sbr.rel (0) target = $region5
  $region4: #{adaptive_spectral_block_t.3} parent=0 // pred_region
    _
  $region5: #{adaptive_spectral_block_t.3} parent=0 // pred_fallthru
    _
  // Predicated region
  $region6: #{adaptive_spectral_block_t.3} parent=0 // pred_check
    _
  $region7: #{adaptive_spectral_block_t.3} parent=0 // pred_check_branch
    %18 = sbr.rel (0) target = $region9
  $region8: #{adaptive_spectral_block_t.3} parent=0 // pred_region
    _
  $region9: #{adaptive_spectral_block_t.3} parent=0 // pred_fallthru
    _
  // Predicated region
  $region10: #{adaptive_spectral_block_t.3} parent=0 // pred_check
    _
  $region11: #{adaptive_spectral_block_t.3} parent=0 // pred_check_branch
    %20 = sbr.rel (0) target = $region13
  $region12: #{adaptive_spectral_block_t.3} parent=0 // pred_region
    _
  $region13: #{adaptive_spectral_block_t.3} parent=0 // pred_fallthru
    _
  // Predicated region
  $region14: #{adaptive_spectral_block_t.3} parent=0 // pred_check
    _
  $region15: #{adaptive_spectral_block_t.3} parent=0 // pred_check_branch
    %22 = sbr.rel (0) target = $region17
  $region16: #{adaptive_spectral_block_t.3} parent=0 // pred_region
    _
  $region17: #{adaptive_spectral_block_t.3} parent=0 // pred_fallthru
    _
  // Predicated region
  $region18: #{adaptive_spectral_block_t.3} parent=0 // pred_check
    _
  $region19: #{adaptive_spectral_block_t.3} parent=0 // pred_check_branch
    %24 = sbr.rel (0) target = $region21
  $region20: #{adaptive_spectral_block_t.3} parent=0 // pred_region
    _
  $region21: #{adaptive_spectral_block_t.3} parent=0 // pred_fallthru
    _
  // Predicated region
  $region22: #{adaptive_spectral_block_t.3} parent=0 // pred_check
    _
  $region23: #{adaptive_spectral_block_t.3} parent=0 // pred_check_branch
    %26 = sbr.rel (0) target = $region25
  $region24: #{adaptive_spectral_block_t.3} parent=0 // pred_region
    _
  $region25: #{adaptive_spectral_block_t.3} parent=0 // pred_fallthru
    _
  // Predicated region
  $region26: #{adaptive_spectral_block_t.3} parent=0 // pred_check
    _
  $region27: #{adaptive_spectral_block_t.3} parent=0 // pred_check_branch
    %28 = sbr.rel (0) target = $region29
  $region28: #{adaptive_spectral_block_t.3} parent=0 // pred_region
    _
  $region29: #{adaptive_spectral_block_t.3} parent=0 // pred_fallthru
    _
  // Predicated region
  $region30: #{adaptive_spectral_block_t.3} parent=0 // pred_check
    _
  $region31: #{adaptive_spectral_block_t.3} parent=0 // pred_check_branch
    %30 = sbr.rel (0) target = $region33
  $region32: #{adaptive_spectral_block_t.3} parent=0 // pred_region
    _
  $region33: #{adaptive_spectral_block_t.3} parent=0 // pred_fallthru
    _
  // Predicated region
  $region34: #{adaptive_spectral_block_t.3} parent=0 // pred_check
    _
  $region35: #{adaptive_spectral_block_t.3} parent=0 // pred_check_branch
    %32 = sbr.rel (0) target = $region37
  $region36: #{adaptive_spectral_block_t.3} parent=0 // pred_region
    _
  $region37: #{adaptive_spectral_block_t.3} parent=0 // pred_fallthru
    _
  %v34 = vld [vmem:[%s1] sm:$0xf]
  %v35 = vld [vmem:[%s1 + $0x4] sm:$0xf]
  %v36 = vld [vmem:[%s1 + $0x8] sm:$0xf]
  %v37 = vld [vmem:[%s1 + $0xc] sm:$0xf]
  %v38 = vld [vmem:[%s1 + $0x10] sm:$0xf]
  %v39 = vld [vmem:[%s1 + $0x14] sm:$0xf]
  %v40 = vld [vmem:[%s1 + $0x18] sm:$0xf]
  %v41 = vld [vmem:[%s1 + $0x1c] sm:$0xf]
  %v42 = vld [vmem:[%s2] sm:$0xff]
  %v43 = vld [vmem:[%s2 + $0x8] sm:$0xff]
  %v44 = vld [vmem:[%s2 + $0x10] sm:$0xff]
  %v45 = vld [vmem:[%s2 + $0x18] sm:$0xff]
  %v46 = vld [vmem:[%s2 + $0x20] sm:$0xff]
  %v47 = vld [vmem:[%s2 + $0x28] sm:$0xff]
  %v48 = vld [vmem:[%s2 + $0x30] sm:$0xff]
  %v49 = vld [vmem:[%s2 + $0x38] sm:$0xff]
  %v50 = vld [vmem:[%s3] sm:$0xf]
  %v51 = vld [vmem:[%s3 + $0x4] sm:$0x1]
  %v52 = vld [vmem:[%s4] sm:$0xf]
  %v53 = vld [vmem:[%s4 + $0x4] sm:$0x1]
  %v54 = vld [vmem:[%s5] sm:$0x1]
  %v55 = vld [vmem:[%s7] sm:$0xff]
  %v56 = vld [vmem:[%s7 + $0x8] sm:$0xff]
  %v57 = vld [vmem:[%s7 + $0x10] sm:$0xff]
  %v58 = vld [vmem:[%s7 + $0x18] sm:$0xff]
  %s59 = sld [smem:[#allocation2]]
  %v60 = vld [vmem:[%s0] sm:$0xff]
  %v61 = vld [vmem:[%s0 + $0x8] sm:$0xff]
  %v62 = vld [vmem:[%s0 + $0x10] sm:$0xff]
  %v63 = vld [vmem:[%s0 + $0x18] sm:$0xff]
  %v64 = vld [vmem:[%s0 + $0x20] sm:$0xff]
  %v65 = vld [vmem:[%s0 + $0x28] sm:$0xff]
  %v66 = vld [vmem:[%s0 + $0x30] sm:$0xff]
  %v67 = vld [vmem:[%s0 + $0x38] sm:$0xff]
  %v68 = vpack.c.bf16 %v61, %v60
  %v69 = vpack.c.bf16 %v63, %v62
  %v70 = vpack.c.bf16 %v65, %v64
  %v71 = vpack.c.bf16 %v67, %v66
  %v74 = vunpack.c.l.b16 %v50
  %v75 = vunpack.c.l.b16 %v51
  %v76 = vpack.c.b16 %v75, %v74
  %vm77 = vcmask 130048
  %v79 = vsel %vm77, %v68, 0
  %v82 = vsel %vm77, %v69, 0
  %v85 = vsel %vm77, %v70, 0
  %v88 = vsel %vm77, %v71, 0
  %v91 = vsel %vm77, %v76, 0
  %93 = vmatprep.subr.bf16.mxu0 0
  %94 = vmatpush1.bf16.xpose.msra.mxu0 %v91
  %95 = vmatprep.subr.bf16.mxu0 0
  %96 = vmatpush1.bf16.xpose.msra.mxu0 0
  %97 = vmatprep.subr.bf16.mxu0 0
  %98 = vmatpush1.bf16.xpose.msra.mxu0 0
  %99 = vmatprep.subr.bf16.mxu0 0
  %100 = vmatpush1.bf16.xpose.msra.mxu0 0
  %101 = vmatprep.subr.bf16.mxu0 0
  %102 = vmatpush1.bf16.xpose.msra.mxu0 0
  %103 = vmatprep.subr.bf16.mxu0 0
  %104 = vmatpush1.bf16.xpose.msra.mxu0 0
  %105 = vmatprep.subr.bf16.mxu0 0
  %106 = vmatpush1.bf16.xpose.msra.mxu0 0
  %107 = vmatprep.subr.bf16.mxu0 0
  %108 = vmatpush1.bf16.xpose.msra.mxu0 0
  %109 = vmatprep.subr.bf16.mxu0 0
  %110 = vmatpush1.bf16.xpose.msra.mxu0 0
  %111 = vmatprep.subr.bf16.mxu0 0
  %112 = vmatpush1.bf16.xpose.msra.mxu0 0
  %113 = vmatprep.subr.bf16.mxu0 0
  %114 = vmatpush1.bf16.xpose.msra.mxu0 0
  %115 = vmatprep.subr.bf16.mxu0 0
  %116 = vmatpush1.bf16.xpose.msra.mxu0 0
  %117 = vmatprep.subr.bf16.mxu0 0
  %118 = vmatpush1.bf16.xpose.msra.mxu0 0
  %119 = vmatprep.subr.bf16.mxu0 0
  %120 = vmatpush1.bf16.xpose.msra.mxu0 0
  %121 = vmatprep.subr.bf16.mxu0 0
  %122 = vmatpush1.bf16.xpose.msra.mxu0 0
  %123 = vmatprep.subr.bf16.mxu0 0
  %124 = vmatpush1.bf16.xpose.msra.mxu0 0
  %125 = vmatprep.mubr.bf16.mxu0 0
  %126 = vmatmul.mubr.bf16.gmra.mrb[0].mxu0 %v79
  %v127 = vpop.f32.mrb[0].mxu0
  %v128 = vadd.f32 0.0, %v127
  %v129 = vpop.f32.mrb[0].mxu0
  %v130 = vpop.f32.mrb[0].mxu0
  %v131 = vadd.f32 0.0, %v130
  %v132 = vpop.f32.mrb[0].mxu0
  %133 = vmatprep.mubr.bf16.mxu0 0
  %134 = vmatmul.mubr.bf16.gmra.mrb[0].mxu0 %v82
  %v135 = vpop.f32.mrb[0].mxu0
  %v136 = vadd.f32 0.0, %v135
  %v137 = vpop.f32.mrb[0].mxu0
  %v138 = vpop.f32.mrb[0].mxu0
  %v139 = vadd.f32 0.0, %v138
  %v140 = vpop.f32.mrb[0].mxu0
  %141 = vmatprep.mubr.bf16.mxu0 0
  %142 = vmatmul.mubr.bf16.gmra.mrb[0].mxu0 %v85
  %v143 = vpop.f32.mrb[0].mxu0
  %v144 = vadd.f32 0.0, %v143
  %v145 = vpop.f32.mrb[0].mxu0
  %v146 = vpop.f32.mrb[0].mxu0
  %v147 = vadd.f32 0.0, %v146
  %v148 = vpop.f32.mrb[0].mxu0
  %149 = vmatprep.mubr.bf16.mxu0 0
  %150 = vmatmul.mubr.bf16.gmra.mrb[0].mxu0 %v88
  %v151 = vpop.f32.mrb[0].mxu0
  %v152 = vadd.f32 0.0, %v151
  %v153 = vpop.f32.mrb[0].mxu0
  %v154 = vpop.f32.mrb[0].mxu0
  %v155 = vadd.f32 0.0, %v154
  %v156 = vpop.f32.mrb[0].mxu0
  %157 = vdwg.mxu0
  %v160 = vunpack.c.l.b16 %v52
  %v161 = vunpack.c.l.b16 %v53
  %v162 = vpack.c.b16 %v161, %v160
  %v164 = vsel %vm77, %v162, 0
  %166 = vmatprep.subr.bf16.mxu0 0
  %167 = vmatpush1.bf16.xpose.msra.mxu0 %v164
  %168 = vmatprep.subr.bf16.mxu0 0
  %169 = vmatpush1.bf16.xpose.msra.mxu0 0
  %170 = vmatprep.subr.bf16.mxu0 0
  %171 = vmatpush1.bf16.xpose.msra.mxu0 0
  %172 = vmatprep.subr.bf16.mxu0 0
  %173 = vmatpush1.bf16.xpose.msra.mxu0 0
  %174 = vmatprep.subr.bf16.mxu0 0
  %175 = vmatpush1.bf16.xpose.msra.mxu0 0
  %176 = vmatprep.subr.bf16.mxu0 0
  %177 = vmatpush1.bf16.xpose.msra.mxu0 0
  %178 = vmatprep.subr.bf16.mxu0 0
  %179 = vmatpush1.bf16.xpose.msra.mxu0 0
  %180 = vmatprep.subr.bf16.mxu0 0
  %181 = vmatpush1.bf16.xpose.msra.mxu0 0
  %182 = vmatprep.subr.bf16.mxu0 0
  %183 = vmatpush1.bf16.xpose.msra.mxu0 0
  %184 = vmatprep.subr.bf16.mxu0 0
  %185 = vmatpush1.bf16.xpose.msra.mxu0 0
  %186 = vmatprep.subr.bf16.mxu0 0
  %187 = vmatpush1.bf16.xpose.msra.mxu0 0
  %188 = vmatprep.subr.bf16.mxu0 0
  %189 = vmatpush1.bf16.xpose.msra.mxu0 0
  %190 = vmatprep.subr.bf16.mxu0 0
  %191 = vmatpush1.bf16.xpose.msra.mxu0 0
  %192 = vmatprep.subr.bf16.mxu0 0
  %193 = vmatpush1.bf16.xpose.msra.mxu0 0
  %194 = vmatprep.subr.bf16.mxu0 0
  %195 = vmatpush1.bf16.xpose.msra.mxu0 0
  %196 = vmatprep.subr.bf16.mxu0 0
  %197 = vmatpush1.bf16.xpose.msra.mxu0 0
  %198 = vmatprep.mubr.bf16.mxu0 0
  %199 = vmatmul.mubr.bf16.gmra.mrb[0].mxu0 %v79
  %v200 = vpop.f32.mrb[0].mxu0
  %v201 = vadd.f32 0.0, %v200
  %v202 = vpop.f32.mrb[0].mxu0
  %v203 = vpop.f32.mrb[0].mxu0
  %v204 = vadd.f32 0.0, %v203
  %v205 = vpop.f32.mrb[0].mxu0
  %206 = vmatprep.mubr.bf16.mxu0 0
  %207 = vmatmul.mubr.bf16.gmra.mrb[0].mxu0 %v82
  %v208 = vpop.f32.mrb[0].mxu0
  %v209 = vadd.f32 0.0, %v208
  %v210 = vpop.f32.mrb[0].mxu0
  %v211 = vpop.f32.mrb[0].mxu0
  %v212 = vadd.f32 0.0, %v211
  %v213 = vpop.f32.mrb[0].mxu0
  %214 = vmatprep.mubr.bf16.mxu0 0
  %215 = vmatmul.mubr.bf16.gmra.mrb[0].mxu0 %v85
  %v216 = vpop.f32.mrb[0].mxu0
  %v217 = vadd.f32 0.0, %v216
  %v218 = vpop.f32.mrb[0].mxu0
  %v219 = vpop.f32.mrb[0].mxu0
  %v220 = vadd.f32 0.0, %v219
  %v221 = vpop.f32.mrb[0].mxu0
  %222 = vmatprep.mubr.bf16.mxu0 0
  %223 = vmatmul.mubr.bf16.gmra.mrb[0].mxu0 %v88
  %v224 = vpop.f32.mrb[0].mxu0
  %v225 = vadd.f32 0.0, %v224
  %v226 = vpop.f32.mrb[0].mxu0
  %v227 = vpop.f32.mrb[0].mxu0
  %v228 = vadd.f32 0.0, %v227
  %v229 = vpop.f32.mrb[0].mxu0
  %230 = vdwg.mxu0
  %v231 = vlaneseq
  %v232 = vand.u32 %v231, 127
  %vm233 = vcmp.eq.s32.totalorder %v232, 0
  %v234 = vsel %vm233, 1, 0
  %v235 = vcvt.s32.f32 %v234
  %v236 = vpack.c.bf16 %v131, %v128
  %v237 = vpack.c.bf16 %v139, %v136
  %239 = vset.pattern.permute.xlu0 0
  %240 = vperm.xlu0 %239, %v42
  %v241 = vpop.permute.xlu0 %240
  %244 = vset.pattern.permute.xlu0 0
  %245 = vperm.xlu0 %244, %v43
  %v246 = vpop.permute.xlu0 %245
  %249 = vset.pattern.permute.xlu0 0
  %250 = vperm.xlu0 %249, %v44
  %v251 = vpop.permute.xlu0 %250
  %254 = vset.pattern.permute.xlu0 0
  %255 = vperm.xlu0 %254, %v45
  %v256 = vpop.permute.xlu0 %255
  %259 = vset.pattern.permute.xlu0 0
  %260 = vperm.xlu0 %259, %v46
  %v261 = vpop.permute.xlu0 %260
  %264 = vset.pattern.permute.xlu0 0
  %265 = vperm.xlu0 %264, %v47
  %v266 = vpop.permute.xlu0 %265
  %269 = vset.pattern.permute.xlu0 0
  %270 = vperm.xlu0 %269, %v48
  %v271 = vpop.permute.xlu0 %270
  %274 = vset.pattern.permute.xlu0 0
  %275 = vperm.xlu0 %274, %v49
  %v276 = vpop.permute.xlu0 %275
  %v278 = vmul.f32 %v241, %v235
  %v279 = vmul.f32 %v246, %v235
  %v280 = vmul.f32 %v251, %v235
  %v281 = vmul.f32 %v256, %v235
  %v282 = vmul.f32 %v261, %v235
  %v283 = vmul.f32 %v266, %v235
  %v284 = vmul.f32 %v271, %v235
  %v285 = vmul.f32 %v276, %v235
  %v294 = vunpack.c.l.b16 %v34
  %v295 = vunpack.c.l.b16 %v35
  %v296 = vunpack.c.l.b16 %v36
  %v297 = vunpack.c.l.b16 %v37
  %v298 = vunpack.c.l.b16 %v38
  %v299 = vunpack.c.l.b16 %v39
  %v300 = vunpack.c.l.b16 %v40
  %v301 = vunpack.c.l.b16 %v41
  %v302 = vpack.c.b16 %v295, %v294
  %v303 = vpack.c.b16 %v297, %v296
  %v304 = vpack.c.b16 %v299, %v298
  %v305 = vpack.c.b16 %v301, %v300
  %vm306 = vcmask 261120
  %v308 = vsel %vm306, %v302, 0
  %v311 = vsel %vm306, %v303, 0
  %v314 = vsel %vm306, %v304, 0
  %v317 = vsel %vm306, %v305, 0
  %319 = vmatprep.subr.bf16.mxu0 0
  %320 = vmatpush1.bf16.msra.mxu0 %v236
  %321 = vmatprep.subr.bf16.mxu0 0
  %322 = vmatpush1.bf16.msra.mxu0 %v237
  %323 = vmatprep.subr.bf16.mxu0 0
  %324 = vmatpush1.bf16.msra.mxu0 0
  %325 = vmatprep.subr.bf16.mxu0 0
  %326 = vmatpush1.bf16.msra.mxu0 0
  %327 = vmatprep.subr.bf16.mxu0 0
  %328 = vmatpush1.bf16.msra.mxu0 0
  %329 = vmatprep.subr.bf16.mxu0 0
  %330 = vmatpush1.bf16.msra.mxu0 0
  %331 = vmatprep.subr.bf16.mxu0 0
  %332 = vmatpush1.bf16.msra.mxu0 0
  %333 = vmatprep.subr.bf16.mxu0 0
  %334 = vmatpush1.bf16.msra.mxu0 0
  %335 = vmatprep.subr.bf16.mxu0 0
  %336 = vmatpush1.bf16.msra.mxu0 0
  %337 = vmatprep.subr.bf16.mxu0 0
  %338 = vmatpush1.bf16.msra.mxu0 0
  %339 = vmatprep.subr.bf16.mxu0 0
  %340 = vmatpush1.bf16.msra.mxu0 0
  %341 = vmatprep.subr.bf16.mxu0 0
  %342 = vmatpush1.bf16.msra.mxu0 0
  %343 = vmatprep.subr.bf16.mxu0 0
  %344 = vmatpush1.bf16.msra.mxu0 0
  %345 = vmatprep.subr.bf16.mxu0 0
  %346 = vmatpush1.bf16.msra.mxu0 0
  %347 = vmatprep.subr.bf16.mxu0 0
  %348 = vmatpush1.bf16.msra.mxu0 0
  %349 = vmatprep.subr.bf16.mxu0 0
  %350 = vmatpush1.bf16.msra.mxu0 0
  %351 = vmatprep.mubr.bf16.mxu0 0
  %352 = vmatmul.mubr.bf16.gmra.mrb[0].mxu0 %v308
  %v353 = vpop.f32.mrb[0].mxu0
  %v354 = vadd.f32 %v278, %v353
  %v355 = vpop.f32.mrb[0].mxu0
  %v356 = vpop.f32.mrb[0].mxu0
  %v357 = vadd.f32 %v279, %v356
  %v358 = vpop.f32.mrb[0].mxu0
  %359 = vmatprep.mubr.bf16.mxu0 0
  %360 = vmatmul.mubr.bf16.gmra.mrb[0].mxu0 %v311
  %v361 = vpop.f32.mrb[0].mxu0
  %v362 = vadd.f32 %v280, %v361
  %v363 = vpop.f32.mrb[0].mxu0
  %v364 = vpop.f32.mrb[0].mxu0
  %v365 = vadd.f32 %v281, %v364
  %v366 = vpop.f32.mrb[0].mxu0
  %367 = vmatprep.mubr.bf16.mxu0 0
  %368 = vmatmul.mubr.bf16.gmra.mrb[0].mxu0 %v314
  %v369 = vpop.f32.mrb[0].mxu0
  %v370 = vadd.f32 %v282, %v369
  %v371 = vpop.f32.mrb[0].mxu0
  %v372 = vpop.f32.mrb[0].mxu0
  %v373 = vadd.f32 %v283, %v372
  %v374 = vpop.f32.mrb[0].mxu0
  %375 = vmatprep.mubr.bf16.mxu0 0
  %376 = vmatmul.mubr.bf16.gmra.mrb[0].mxu0 %v317
  %v377 = vpop.f32.mrb[0].mxu0
  %v378 = vadd.f32 %v284, %v377
  %v379 = vpop.f32.mrb[0].mxu0
  %v380 = vpop.f32.mrb[0].mxu0
  %v381 = vadd.f32 %v285, %v380
  %v382 = vpop.f32.mrb[0].mxu0
  %383 = vdwg.mxu0
  %v384 = vpack.c.bf16 %v204, %v201
  %v385 = vpack.c.bf16 %v212, %v209
  %386 = vmatprep.subr.bf16.mxu0 0
  %387 = vmatpush1.bf16.msra.mxu0 %v384
  %388 = vmatprep.subr.bf16.mxu0 0
  %389 = vmatpush1.bf16.msra.mxu0 %v385
  %390 = vmatprep.subr.bf16.mxu0 0
  %391 = vmatpush1.bf16.msra.mxu0 0
  %392 = vmatprep.subr.bf16.mxu0 0
  %393 = vmatpush1.bf16.msra.mxu0 0
  %394 = vmatprep.subr.bf16.mxu0 0
  %395 = vmatpush1.bf16.msra.mxu0 0
  %396 = vmatprep.subr.bf16.mxu0 0
  %397 = vmatpush1.bf16.msra.mxu0 0
  %398 = vmatprep.subr.bf16.mxu0 0
  %399 = vmatpush1.bf16.msra.mxu0 0
  %400 = vmatprep.subr.bf16.mxu0 0
  %401 = vmatpush1.bf16.msra.mxu0 0
  %402 = vmatprep.subr.bf16.mxu0 0
  %403 = vmatpush1.bf16.msra.mxu0 0
  %404 = vmatprep.subr.bf16.mxu0 0
  %405 = vmatpush1.bf16.msra.mxu0 0
  %406 = vmatprep.subr.bf16.mxu0 0
  %407 = vmatpush1.bf16.msra.mxu0 0
  %408 = vmatprep.subr.bf16.mxu0 0
  %409 = vmatpush1.bf16.msra.mxu0 0
  %410 = vmatprep.subr.bf16.mxu0 0
  %411 = vmatpush1.bf16.msra.mxu0 0
  %412 = vmatprep.subr.bf16.mxu0 0
  %413 = vmatpush1.bf16.msra.mxu0 0
  %414 = vmatprep.subr.bf16.mxu0 0
  %415 = vmatpush1.bf16.msra.mxu0 0
  %416 = vmatprep.subr.bf16.mxu0 0
  %417 = vmatpush1.bf16.msra.mxu0 0
  %418 = vmatprep.mubr.bf16.mxu0 0
  %419 = vmatmul.mubr.bf16.gmra.mrb[0].mxu0 %v308
  %v420 = vpop.f32.mrb[0].mxu0
  %v421 = vadd.f32 0.0, %v420
  %v422 = vpop.f32.mrb[0].mxu0
  %v423 = vpop.f32.mrb[0].mxu0
  %v424 = vadd.f32 0.0, %v423
  %v425 = vpop.f32.mrb[0].mxu0
  %426 = vmatprep.mubr.bf16.mxu0 0
  %427 = vmatmul.mubr.bf16.gmra.mrb[0].mxu0 %v311
  %v428 = vpop.f32.mrb[0].mxu0
  %v429 = vadd.f32 0.0, %v428
  %v430 = vpop.f32.mrb[0].mxu0
  %v431 = vpop.f32.mrb[0].mxu0
  %v432 = vadd.f32 0.0, %v431
  %v433 = vpop.f32.mrb[0].mxu0
  %434 = vmatprep.mubr.bf16.mxu0 0
  %435 = vmatmul.mubr.bf16.gmra.mrb[0].mxu0 %v314
  %v436 = vpop.f32.mrb[0].mxu0
  %v437 = vadd.f32 0.0, %v436
  %v438 = vpop.f32.mrb[0].mxu0
  %v439 = vpop.f32.mrb[0].mxu0
  %v440 = vadd.f32 0.0, %v439
  %v441 = vpop.f32.mrb[0].mxu0
  %442 = vmatprep.mubr.bf16.mxu0 0
  %443 = vmatmul.mubr.bf16.gmra.mrb[0].mxu0 %v317
  %v444 = vpop.f32.mrb[0].mxu0
  %v445 = vadd.f32 0.0, %v444
  %v446 = vpop.f32.mrb[0].mxu0
  %v447 = vpop.f32.mrb[0].mxu0
  %v448 = vadd.f32 0.0, %v447
  %v449 = vpop.f32.mrb[0].mxu0
  %450 = vdwg.mxu0
  %v451 = vsub.f32 0.0, %v421
  %v452 = vsub.f32 0.0, %v424
  %v453 = vsub.f32 0.0, %v429
  %v454 = vsub.f32 0.0, %v432
  %v455 = vpack.c.bf16 %v357, %v354
  %v456 = vpack.c.bf16 %v365, %v362
  %v457 = vpack.c.bf16 %v452, %v451
  %v458 = vpack.c.bf16 %v454, %v453
  %v459 = vpack.c.bf16 %v424, %v421
  %v460 = vpack.c.bf16 %v432, %v429
  %461 = vxpose.xlu0.c.b16.start [1/8] %v236, 128
  %462 = vxpose.xlu0.c.b16.cont [2/8] %v237, 128
  %463 = vxpose.xlu0.c.b16.cont [3/8] %v384, 128
  %464 = vxpose.xlu0.c.b16.cont [4/8] %v385, 128
  %465 = vxpose.xlu0.c.b16.cont [5/8] 0, 128
  %466 = vxpose.xlu0.c.b16.cont [6/8] 0, 128
  %467 = vxpose.xlu0.c.b16.cont [7/8] 0, 128
  %468 = vxpose.xlu0.c.b16.end [8/8] 0, 128
  %v469 = vpop.trf.xlu0
  %v470 = vpop.trf.xlu0
  %v471 = vpop.trf.xlu0
  %v472 = vpop.trf.xlu0
  %v473 = vpop.trf.xlu0
  %v474 = vpop.trf.xlu0
  %v475 = vpop.trf.xlu0
  %v476 = vpop.trf.xlu0
  %vm477 = vcmask 523264
  %v479 = vsel %vm477, %v469, 0
  %481 = vmatprep.subr.bf16.mxu0 0
  %482 = vmatpush1.bf16.msra.mxu0 %v455
  %483 = vmatprep.subr.bf16.mxu0 0
  %484 = vmatpush1.bf16.msra.mxu0 %v456
  %485 = vmatprep.subr.bf16.mxu0 0
  %486 = vmatpush1.bf16.msra.mxu0 %v457
  %487 = vmatprep.subr.bf16.mxu0 0
  %488 = vmatpush1.bf16.msra.mxu0 %v458
  %489 = vmatprep.subr.bf16.mxu0 0
  %490 = vmatpush1.bf16.msra.mxu0 0
  %491 = vmatprep.subr.bf16.mxu0 0
  %492 = vmatpush1.bf16.msra.mxu0 0
  %493 = vmatprep.subr.bf16.mxu0 0
  %494 = vmatpush1.bf16.msra.mxu0 0
  %495 = vmatprep.subr.bf16.mxu0 0
  %496 = vmatpush1.bf16.msra.mxu0 0
  %497 = vmatprep.subr.bf16.mxu0 0
  %498 = vmatpush1.bf16.msra.mxu0 0
  %499 = vmatprep.subr.bf16.mxu0 0
  %500 = vmatpush1.bf16.msra.mxu0 0
  %501 = vmatprep.subr.bf16.mxu0 0
  %502 = vmatpush1.bf16.msra.mxu0 0
  %503 = vmatprep.subr.bf16.mxu0 0
  %504 = vmatpush1.bf16.msra.mxu0 0
  %505 = vmatprep.subr.bf16.mxu0 0
  %506 = vmatpush1.bf16.msra.mxu0 0
  %507 = vmatprep.subr.bf16.mxu0 0
  %508 = vmatpush1.bf16.msra.mxu0 0
  %509 = vmatprep.subr.bf16.mxu0 0
  %510 = vmatpush1.bf16.msra.mxu0 0
  %511 = vmatprep.subr.bf16.mxu0 0
  %512 = vmatpush1.bf16.msra.mxu0 0
  %513 = vmatprep.mubr.bf16.mxu0 0
  %514 = vmatmul.mubr.bf16.gmra.mrb[0].mxu0 %v479
  %v515 = vpop.f32.mrb[0].mxu0
  %v516 = vadd.f32 0.0, %v515
  %v517 = vpop.f32.mrb[0].mxu0
  %v518 = vpop.f32.mrb[0].mxu0
  %v519 = vadd.f32 0.0, %v518
  %v520 = vpop.f32.mrb[0].mxu0
  %521 = vdwg.mxu0
  %v522 = vmul.f32 %v516, 0.17677669
  %v523 = vmul.f32 %v519, 0.17677669
  %524 = vmatprep.subr.bf16.mxu0 0
  %525 = vmatpush1.bf16.msra.mxu0 %v459
  %526 = vmatprep.subr.bf16.mxu0 0
  %527 = vmatpush1.bf16.msra.mxu0 %v460
  %528 = vmatprep.subr.bf16.mxu0 0
  %529 = vmatpush1.bf16.msra.mxu0 %v455
  %530 = vmatprep.subr.bf16.mxu0 0
  %531 = vmatpush1.bf16.msra.mxu0 %v456
  %532 = vmatprep.subr.bf16.mxu0 0
  %533 = vmatpush1.bf16.msra.mxu0 0
  %534 = vmatprep.subr.bf16.mxu0 0
  %535 = vmatpush1.bf16.msra.mxu0 0
  %536 = vmatprep.subr.bf16.mxu0 0
  %537 = vmatpush1.bf16.msra.mxu0 0
  %538 = vmatprep.subr.bf16.mxu0 0
  %539 = vmatpush1.bf16.msra.mxu0 0
  %540 = vmatprep.subr.bf16.mxu0 0
  %541 = vmatpush1.bf16.msra.mxu0 0
  %542 = vmatprep.subr.bf16.mxu0 0
  %543 = vmatpush1.bf16.msra.mxu0 0
  %544 = vmatprep.subr.bf16.mxu0 0
  %545 = vmatpush1.bf16.msra.mxu0 0
  %546 = vmatprep.subr.bf16.mxu0 0
  %547 = vmatpush1.bf16.msra.mxu0 0
  %548 = vmatprep.subr.bf16.mxu0 0
  %549 = vmatpush1.bf16.msra.mxu0 0
  %550 = vmatprep.subr.bf16.mxu0 0
  %551 = vmatpush1.bf16.msra.mxu0 0
  %552 = vmatprep.subr.bf16.mxu0 0
  %553 = vmatpush1.bf16.msra.mxu0 0
  %554 = vmatprep.subr.bf16.mxu0 0
  %555 = vmatpush1.bf16.msra.mxu0 0
  %556 = vmatprep.mubr.bf16.mxu0 0
  %557 = vmatmul.mubr.bf16.gmra.mrb[0].mxu0 %v479
  %v558 = vpop.f32.mrb[0].mxu0
  %v559 = vadd.f32 0.0, %v558
  %v560 = vpop.f32.mrb[0].mxu0
  %v561 = vpop.f32.mrb[0].mxu0
  %v562 = vadd.f32 0.0, %v561
  %v563 = vpop.f32.mrb[0].mxu0
  %564 = vdwg.mxu0
  %v565 = vmul.f32 %v559, 0.17677669
  %v566 = vmul.f32 %v562, 0.17677669
  %v567 = vmul.f32 %v522, %v522
  %v568 = vmul.f32 %v523, %v523
  %v569 = vmul.f32 %v565, %v565
  %v570 = vmul.f32 %v566, %v566
  %v571 = vadd.f32 %v567, %v569
  %v572 = vadd.f32 %v568, %v570
  %v573 = vrsqrt.pop %v571
  %v574 = vmul.f32 %v571, %v573
  %vm575 = vcmp.eq.f32.partialorder %v571, inf
  %v576 = vsel %vm575, %v571, %v574
  %vm577 = vcmp.eq.f32.partialorder %v571, 0.0
  %v578 = vand.u32 %v571, 2147483648
  %v579 = vsel %vm577, %v578, %v576
  %v580 = vrsqrt.pop %v572
  %v581 = vmul.f32 %v572, %v580
  %vm582 = vcmp.eq.f32.partialorder %v572, inf
  %v583 = vsel %vm582, %v572, %v581
  %vm584 = vcmp.eq.f32.partialorder %v572, 0.0
  %v585 = vand.u32 %v572, 2147483648
  %v586 = vsel %vm584, %v585, %v583
  %vm587 = vcmask 72704
  %v588 = vsel %vm587, %v579, -inf
  %589 = vmax.xlane.f32.xlu0 %v588
  %v590 = vpop.xlane.xlu0 %589
  %vm591 = vcmask 65536
  %v592 = vsel %vm591, %v586, -inf
  %593 = vmax.xlane.f32.xlu0 %v592
  %v594 = vpop.xlane.xlu0 %593
  %v595 = vsub.f32 %v579, %v590
  %v596 = vsub.f32 %v586, %v594
  %v597 = vmul.f32 %v595, 1.442695
  %v598 = vpow.pop %v597
  %v599 = vmul.f32 %v596, 1.442695
  %v600 = vpow.pop %v599
  %v601 = vsel %vm587, %v598, 0.0
  %602 = vadd.xlane.f32.xlu0 %v601
  %v603 = vpop.xlane.xlu0 %602
  %v604 = vsel %vm591, %v600, 0.0
  %605 = vadd.xlane.f32.xlu0 %v604
  %v606 = vpop.xlane.xlu0 %605
  %v607 = vrcp.pop %v603
  %v608 = vrcp.pop %v606
  %v609 = vmul.f32 %v598, %v607
  %v610 = vmul.f32 %v600, %v608
  %v611 = vpack.c.bf16 %v373, %v370
  %v612 = vpack.c.bf16 %v381, %v378
  %v613 = vpack.c.bf16 %v440, %v437
  %v614 = vpack.c.bf16 %v448, %v445
  %v615 = vpack.c.bf16 %v610, %v609
  %v617 = vsel %vm587, %v611, 0
  %v620 = vsel %vm587, %v612, 0
  %v623 = vsel %vm587, %v613, 0
  %v626 = vsel %vm587, %v614, 0
  %v629 = vsel %vm587, %v615, 0
  %631 = vmatprep.subr.bf16.mxu0 0
  %632 = vmatpush1.bf16.xpose.msra.mxu0 %v629
  %633 = vmatprep.subr.bf16.mxu0 0
  %634 = vmatpush1.bf16.xpose.msra.mxu0 0
  %635 = vmatprep.subr.bf16.mxu0 0
  %636 = vmatpush1.bf16.xpose.msra.mxu0 0
  %637 = vmatprep.subr.bf16.mxu0 0
  %638 = vmatpush1.bf16.xpose.msra.mxu0 0
  %639 = vmatprep.subr.bf16.mxu0 0
  %640 = vmatpush1.bf16.xpose.msra.mxu0 0
  %641 = vmatprep.subr.bf16.mxu0 0
  %642 = vmatpush1.bf16.xpose.msra.mxu0 0
  %643 = vmatprep.subr.bf16.mxu0 0
  %644 = vmatpush1.bf16.xpose.msra.mxu0 0
  %645 = vmatprep.subr.bf16.mxu0 0
  %646 = vmatpush1.bf16.xpose.msra.mxu0 0
  %647 = vmatprep.subr.bf16.mxu0 0
  %648 = vmatpush1.bf16.xpose.msra.mxu0 0
  %649 = vmatprep.subr.bf16.mxu0 0
  %650 = vmatpush1.bf16.xpose.msra.mxu0 0
  %651 = vmatprep.subr.bf16.mxu0 0
  %652 = vmatpush1.bf16.xpose.msra.mxu0 0
  %653 = vmatprep.subr.bf16.mxu0 0
  %654 = vmatpush1.bf16.xpose.msra.mxu0 0
  %655 = vmatprep.subr.bf16.mxu0 0
  %656 = vmatpush1.bf16.xpose.msra.mxu0 0
  %657 = vmatprep.subr.bf16.mxu0 0
  %658 = vmatpush1.bf16.xpose.msra.mxu0 0
  %659 = vmatprep.subr.bf16.mxu0 0
  %660 = vmatpush1.bf16.xpose.msra.mxu0 0
  %661 = vmatprep.subr.bf16.mxu0 0
  %662 = vmatpush1.bf16.xpose.msra.mxu0 0
  %663 = vmatprep.mubr.bf16.mxu0 0
  %664 = vmatmul.mubr.bf16.gmra.mrb[0].mxu0 %v617
  %v665 = vpop.f32.mrb[0].mxu0
  %v666 = vadd.f32 0.0, %v665
  %v667 = vpop.f32.mrb[0].mxu0
  %v668 = vpop.f32.mrb[0].mxu0
  %v669 = vadd.f32 0.0, %v668
  %v670 = vpop.f32.mrb[0].mxu0
  %671 = vmatprep.mubr.bf16.mxu0 0
  %672 = vmatmul.mubr.bf16.gmra.mrb[0].mxu0 %v620
  %v673 = vpop.f32.mrb[0].mxu0
  %v674 = vadd.f32 0.0, %v673
  %v675 = vpop.f32.mrb[0].mxu0
  %v676 = vpop.f32.mrb[0].mxu0
  %v677 = vadd.f32 0.0, %v676
  %v678 = vpop.f32.mrb[0].mxu0
  %679 = vmatprep.mubr.bf16.mxu0 0
  %680 = vmatmul.mubr.bf16.gmra.mrb[0].mxu0 %v623
  %v681 = vpop.f32.mrb[0].mxu0
  %v682 = vadd.f32 0.0, %v681
  %v683 = vpop.f32.mrb[0].mxu0
  %v684 = vpop.f32.mrb[0].mxu0
  %v685 = vadd.f32 0.0, %v684
  %v686 = vpop.f32.mrb[0].mxu0
  %687 = vmatprep.mubr.bf16.mxu0 0
  %688 = vmatmul.mubr.bf16.gmra.mrb[0].mxu0 %v626
  %v689 = vpop.f32.mrb[0].mxu0
  %v690 = vadd.f32 0.0, %v689
  %v691 = vpop.f32.mrb[0].mxu0
  %v692 = vpop.f32.mrb[0].mxu0
  %v693 = vadd.f32 0.0, %v692
  %v694 = vpop.f32.mrb[0].mxu0
  %695 = vdwg.mxu0
  %v696 = vld [vmem:[%s6] sm:$0x1]
  %v697 = vstv %s59
  %vm698 = vcmp.gt.f32.partialorder %v696, %v697
  %v699 = vsel %vm698, 1, 0
  %v700 = vcvt.s32.f32 %v699
  %v702 = vlaneseq
  %v703 = vshrl.u32 %v702, 7
  %v704 = vsub.s32 0, %v703
  %v705 = vrot.slane %v700, %v704
  %v707 = vmul.f32 %v128, %v705
  %v708 = vmul.f32 %v131, %v705
  %v709 = vmul.f32 %v136, %v705
  %v710 = vmul.f32 %v139, %v705
  %v711 = vmul.f32 %v201, %v705
  %v712 = vmul.f32 %v204, %v705
  %v713 = vmul.f32 %v209, %v705
  %v714 = vmul.f32 %v212, %v705
  %716 = vset.pattern.permute.xlu0 0
  %717 = vperm.xlu0 %716, %v55
  %v718 = vpop.permute.xlu0 %717
  %721 = vset.pattern.permute.xlu0 0
  %722 = vperm.xlu0 %721, %v56
  %v723 = vpop.permute.xlu0 %722
  %726 = vset.pattern.permute.xlu0 0
  %727 = vperm.xlu0 %726, %v57
  %v728 = vpop.permute.xlu0 %727
  %731 = vset.pattern.permute.xlu0 0
  %732 = vperm.xlu0 %731, %v58
  %v733 = vpop.permute.xlu0 %732
  %v735 = vmul.f32 %v707, %v718
  %v736 = vmul.f32 %v708, %v723
  %v737 = vmul.f32 %v709, %v728
  %v738 = vmul.f32 %v710, %v733
  %v739 = vadd.f32 %v666, %v735
  %v740 = vadd.f32 %v669, %v736
  %v741 = vadd.f32 %v674, %v737
  %v742 = vadd.f32 %v677, %v738
  %743 = vset.pattern.permute.xlu0 1
  %744 = vperm.xlu0 %743, %v55
  %v745 = vpop.permute.xlu0 %744
  %747 = vset.pattern.permute.xlu0 1
  %748 = vperm.xlu0 %747, %v56
  %v749 = vpop.permute.xlu0 %748
  %751 = vset.pattern.permute.xlu0 1
  %752 = vperm.xlu0 %751, %v57
  %v753 = vpop.permute.xlu0 %752
  %755 = vset.pattern.permute.xlu0 1
  %756 = vperm.xlu0 %755, %v58
  %v757 = vpop.permute.xlu0 %756
  %v759 = vmul.f32 %v711, %v745
  %v760 = vmul.f32 %v712, %v749
  %v761 = vmul.f32 %v713, %v753
  %v762 = vmul.f32 %v714, %v757
  %v763 = vsub.f32 %v739, %v759
  %v764 = vsub.f32 %v740, %v760
  %v765 = vsub.f32 %v741, %v761
  %v766 = vsub.f32 %v742, %v762
  %v767 = vmul.f32 %v707, %v745
  %v768 = vmul.f32 %v708, %v749
  %v769 = vmul.f32 %v709, %v753
  %v770 = vmul.f32 %v710, %v757
  %v771 = vadd.f32 %v682, %v767
  %v772 = vadd.f32 %v685, %v768
  %v773 = vadd.f32 %v690, %v769
  %v774 = vadd.f32 %v693, %v770
  %v775 = vmul.f32 %v711, %v718
  %v776 = vmul.f32 %v712, %v723
  %v777 = vmul.f32 %v713, %v728
  %v778 = vmul.f32 %v714, %v733
  %v779 = vadd.f32 %v771, %v775
  %v780 = vadd.f32 %v772, %v776
  %v781 = vadd.f32 %v773, %v777
  %v782 = vadd.f32 %v774, %v778
  %v784 = vlaneseq
  %v785 = vshrl.u32 %v784, 7
  %v786 = vsub.s32 0, %v785
  %v787 = vrot.slane %v54, %v786
  %v789 = vmul.f32 %v763, %v787
  %v790 = vmul.f32 %v764, %v787
  %v791 = vmul.f32 %v765, %v787
  %v792 = vmul.f32 %v766, %v787
  %v793 = vpack.c.bf16 %v790, %v789
  %v794 = vpack.c.bf16 %v792, %v791
  %v795 = vmul.f32 %v779, %v787
  %v796 = vmul.f32 %v780, %v787
  %v797 = vmul.f32 %v781, %v787
  %v798 = vmul.f32 %v782, %v787
  %v799 = vpack.c.bf16 %v796, %v795
  %v800 = vpack.c.bf16 %v798, %v797
  %v802 = vsel %vm587, %v799, 0
  %v805 = vsel %vm587, %v800, 0
  %vm807 = vcmask 1043456
  %vm808 = vcmask 1044480
  %v809 = vsel %vm807, 4294967295, 65535
  %v810 = vsel %vm808, %v809, 0
  %v811 = vand.u32 %v162, %v810
  %813 = vmatprep.subr.bf16.mxu0 0
  %814 = vmatpush1.bf16.msra.mxu0 %v811
  %815 = vmatprep.subr.bf16.mxu0 0
  %816 = vmatpush1.bf16.msra.mxu0 0
  %817 = vmatprep.subr.bf16.mxu0 0
  %818 = vmatpush1.bf16.msra.mxu0 0
  %819 = vmatprep.subr.bf16.mxu0 0
  %820 = vmatpush1.bf16.msra.mxu0 0
  %821 = vmatprep.subr.bf16.mxu0 0
  %822 = vmatpush1.bf16.msra.mxu0 0
  %823 = vmatprep.subr.bf16.mxu0 0
  %824 = vmatpush1.bf16.msra.mxu0 0
  %825 = vmatprep.subr.bf16.mxu0 0
  %826 = vmatpush1.bf16.msra.mxu0 0
  %827 = vmatprep.subr.bf16.mxu0 0
  %828 = vmatpush1.bf16.msra.mxu0 0
  %829 = vmatprep.subr.bf16.mxu0 0
  %830 = vmatpush1.bf16.msra.mxu0 0
  %831 = vmatprep.subr.bf16.mxu0 0
  %832 = vmatpush1.bf16.msra.mxu0 0
  %833 = vmatprep.subr.bf16.mxu0 0
  %834 = vmatpush1.bf16.msra.mxu0 0
  %835 = vmatprep.subr.bf16.mxu0 0
  %836 = vmatpush1.bf16.msra.mxu0 0
  %837 = vmatprep.subr.bf16.mxu0 0
  %838 = vmatpush1.bf16.msra.mxu0 0
  %839 = vmatprep.subr.bf16.mxu0 0
  %840 = vmatpush1.bf16.msra.mxu0 0
  %841 = vmatprep.subr.bf16.mxu0 0
  %842 = vmatpush1.bf16.msra.mxu0 0
  %843 = vmatprep.subr.bf16.mxu0 0
  %844 = vmatpush1.bf16.msra.mxu0 0
  %845 = vmatprep.mubr.bf16.mxu0 0
  %846 = vmatmul.mubr.bf16.gmra.mrb[0].mxu0 %v802
  %v847 = vpop.f32.mrb[0].mxu0
  %v848 = vadd.f32 0.0, %v847
  %v849 = vpop.f32.mrb[0].mxu0
  %v850 = vpop.f32.mrb[0].mxu0
  %v851 = vadd.f32 0.0, %v850
  %v852 = vpop.f32.mrb[0].mxu0
  %853 = vmatprep.mubr.bf16.mxu0 0
  %854 = vmatmul.mubr.bf16.gmra.mrb[0].mxu0 %v805
  %v855 = vpop.f32.mrb[0].mxu0
  %v856 = vadd.f32 0.0, %v855
  %v857 = vpop.f32.mrb[0].mxu0
  %v858 = vpop.f32.mrb[0].mxu0
  %v859 = vadd.f32 0.0, %v858
  %v860 = vpop.f32.mrb[0].mxu0
  %861 = vdwg.mxu0
  %v863 = vsel %vm587, %v793, 0
  %v866 = vsel %vm587, %v794, 0
  %v868 = vand.u32 %v76, %v810
  %870 = vmatprep.subr.bf16.mxu0 0
  %871 = vmatpush1.bf16.msra.mxu0 %v868
  %872 = vmatprep.subr.bf16.mxu0 0
  %873 = vmatpush1.bf16.msra.mxu0 0
  %874 = vmatprep.subr.bf16.mxu0 0
  %875 = vmatpush1.bf16.msra.mxu0 0
  %876 = vmatprep.subr.bf16.mxu0 0
  %877 = vmatpush1.bf16.msra.mxu0 0
  %878 = vmatprep.subr.bf16.mxu0 0
  %879 = vmatpush1.bf16.msra.mxu0 0
  %880 = vmatprep.subr.bf16.mxu0 0
  %881 = vmatpush1.bf16.msra.mxu0 0
  %882 = vmatprep.subr.bf16.mxu0 0
  %883 = vmatpush1.bf16.msra.mxu0 0
  %884 = vmatprep.subr.bf16.mxu0 0
  %885 = vmatpush1.bf16.msra.mxu0 0
  %886 = vmatprep.subr.bf16.mxu0 0
  %887 = vmatpush1.bf16.msra.mxu0 0
  %888 = vmatprep.subr.bf16.mxu0 0
  %889 = vmatpush1.bf16.msra.mxu0 0
  %890 = vmatprep.subr.bf16.mxu0 0
  %891 = vmatpush1.bf16.msra.mxu0 0
  %892 = vmatprep.subr.bf16.mxu0 0
  %893 = vmatpush1.bf16.msra.mxu0 0
  %894 = vmatprep.subr.bf16.mxu0 0
  %895 = vmatpush1.bf16.msra.mxu0 0
  %896 = vmatprep.subr.bf16.mxu0 0
  %897 = vmatpush1.bf16.msra.mxu0 0
  %898 = vmatprep.subr.bf16.mxu0 0
  %899 = vmatpush1.bf16.msra.mxu0 0
  %900 = vmatprep.subr.bf16.mxu0 0
  %901 = vmatpush1.bf16.msra.mxu0 0
  %902 = vmatprep.mubr.bf16.mxu0 0
  %903 = vmatmul.mubr.bf16.gmra.mrb[0].mxu0 %v863
  %v904 = vpop.f32.mrb[0].mxu0
  %v905 = vadd.f32 %v848, %v904
  %v906 = vpop.f32.mrb[0].mxu0
  %v907 = vpop.f32.mrb[0].mxu0
  %v908 = vadd.f32 %v851, %v907
  %v909 = vpop.f32.mrb[0].mxu0
  %910 = vmatprep.mubr.bf16.mxu0 0
  %911 = vmatmul.mubr.bf16.gmra.mrb[0].mxu0 %v866
  %v912 = vpop.f32.mrb[0].mxu0
  %v913 = vadd.f32 %v856, %v912
  %v914 = vpop.f32.mrb[0].mxu0
  %v915 = vpop.f32.mrb[0].mxu0
  %v916 = vadd.f32 %v859, %v915
  %v917 = vpop.f32.mrb[0].mxu0
  %918 = vdwg.mxu0
  %919 = vst.msk [vmem:[%s9] sm:$0xff] %vm77, %v905
  %920 = vst.msk [vmem:[%s9 + $0x8] sm:$0xff] %vm77, %v908
  %921 = vst.msk [vmem:[%s9 + $0x10] sm:$0xff] %vm77, %v913
  %922 = vst.msk [vmem:[%s9 + $0x18] sm:$0xff] %vm77, %v916
  %v923 = vpack.c.bf16 %v147, %v144
  %v924 = vpack.c.bf16 %v155, %v152
  %925 = vmatprep.subr.bf16.mxu0 0
  %926 = vmatpush1.bf16.msra.mxu0 %v923
  %927 = vmatprep.subr.bf16.mxu0 0
  %928 = vmatpush1.bf16.msra.mxu0 %v924
  %929 = vmatprep.subr.bf16.mxu0 0
  %930 = vmatpush1.bf16.msra.mxu0 0
  %931 = vmatprep.subr.bf16.mxu0 0
  %932 = vmatpush1.bf16.msra.mxu0 0
  %933 = vmatprep.subr.bf16.mxu0 0
  %934 = vmatpush1.bf16.msra.mxu0 0
  %935 = vmatprep.subr.bf16.mxu0 0
  %936 = vmatpush1.bf16.msra.mxu0 0
  %937 = vmatprep.subr.bf16.mxu0 0
  %938 = vmatpush1.bf16.msra.mxu0 0
  %939 = vmatprep.subr.bf16.mxu0 0
  %940 = vmatpush1.bf16.msra.mxu0 0
  %941 = vmatprep.subr.bf16.mxu0 0
  %942 = vmatpush1.bf16.msra.mxu0 0
  %943 = vmatprep.subr.bf16.mxu0 0
  %944 = vmatpush1.bf16.msra.mxu0 0
  %945 = vmatprep.subr.bf16.mxu0 0
  %946 = vmatpush1.bf16.msra.mxu0 0
  %947 = vmatprep.subr.bf16.mxu0 0
  %948 = vmatpush1.bf16.msra.mxu0 0
  %949 = vmatprep.subr.bf16.mxu0 0
  %950 = vmatpush1.bf16.msra.mxu0 0
  %951 = vmatprep.subr.bf16.mxu0 0
  %952 = vmatpush1.bf16.msra.mxu0 0
  %953 = vmatprep.subr.bf16.mxu0 0
  %954 = vmatpush1.bf16.msra.mxu0 0
  %955 = vmatprep.subr.bf16.mxu0 0
  %956 = vmatpush1.bf16.msra.mxu0 0
  %957 = vmatprep.mubr.bf16.mxu0 0
  %958 = vmatmul.mubr.bf16.gmra.mrb[0].mxu0 %v308
  %v959 = vpop.f32.mrb[0].mxu0
  %v960 = vadd.f32 %v278, %v959
  %v961 = vpop.f32.mrb[0].mxu0
  %v962 = vpop.f32.mrb[0].mxu0
  %v963 = vadd.f32 %v279, %v962
  %v964 = vpop.f32.mrb[0].mxu0
  %965 = vmatprep.mubr.bf16.mxu0 0
  %966 = vmatmul.mubr.bf16.gmra.mrb[0].mxu0 %v311
  %v967 = vpop.f32.mrb[0].mxu0
  %v968 = vadd.f32 %v280, %v967
  %v969 = vpop.f32.mrb[0].mxu0
  %v970 = vpop.f32.mrb[0].mxu0
  %v971 = vadd.f32 %v281, %v970
  %v972 = vpop.f32.mrb[0].mxu0
  %973 = vmatprep.mubr.bf16.mxu0 0
  %974 = vmatmul.mubr.bf16.gmra.mrb[0].mxu0 %v314
  %v975 = vpop.f32.mrb[0].mxu0
  %v976 = vadd.f32 %v282, %v975
  %v977 = vpop.f32.mrb[0].mxu0
  %v978 = vpop.f32.mrb[0].mxu0
  %v979 = vadd.f32 %v283, %v978
  %v980 = vpop.f32.mrb[0].mxu0
  %981 = vmatprep.mubr.bf16.mxu0 0
  %982 = vmatmul.mubr.bf16.gmra.mrb[0].mxu0 %v317
  %v983 = vpop.f32.mrb[0].mxu0
  %v984 = vadd.f32 %v284, %v983
  %v985 = vpop.f32.mrb[0].mxu0
  %v986 = vpop.f32.mrb[0].mxu0
  %v987 = vadd.f32 %v285, %v986
  %v988 = vpop.f32.mrb[0].mxu0
  %989 = vdwg.mxu0
  %v990 = vpack.c.bf16 %v220, %v217
  %v991 = vpack.c.bf16 %v228, %v225
  %992 = vmatprep.subr.bf16.mxu0 0
  %993 = vmatpush1.bf16.msra.mxu0 %v990
  %994 = vmatprep.subr.bf16.mxu0 0
  %995 = vmatpush1.bf16.msra.mxu0 %v991
  %996 = vmatprep.subr.bf16.mxu0 0
  %997 = vmatpush1.bf16.msra.mxu0 0
  %998 = vmatprep.subr.bf16.mxu0 0
  %999 = vmatpush1.bf16.msra.mxu0 0
  %1000 = vmatprep.subr.bf16.mxu0 0
  %1001 = vmatpush1.bf16.msra.mxu0 0
  %1002 = vmatprep.subr.bf16.mxu0 0
  %1003 = vmatpush1.bf16.msra.mxu0 0
  %1004 = vmatprep.subr.bf16.mxu0 0
  %1005 = vmatpush1.bf16.msra.mxu0 0
  %1006 = vmatprep.subr.bf16.mxu0 0
  %1007 = vmatpush1.bf16.msra.mxu0 0
  %1008 = vmatprep.subr.bf16.mxu0 0
  %1009 = vmatpush1.bf16.msra.mxu0 0
  %1010 = vmatprep.subr.bf16.mxu0 0
  %1011 = vmatpush1.bf16.msra.mxu0 0
  %1012 = vmatprep.subr.bf16.mxu0 0
  %1013 = vmatpush1.bf16.msra.mxu0 0
  %1014 = vmatprep.subr.bf16.mxu0 0
  %1015 = vmatpush1.bf16.msra.mxu0 0
  %1016 = vmatprep.subr.bf16.mxu0 0
  %1017 = vmatpush1.bf16.msra.mxu0 0
  %1018 = vmatprep.subr.bf16.mxu0 0
  %1019 = vmatpush1.bf16.msra.mxu0 0
  %1020 = vmatprep.subr.bf16.mxu0 0
  %1021 = vmatpush1.bf16.msra.mxu0 0
  %1022 = vmatprep.subr.bf16.mxu0 0
  %1023 = vmatpush1.bf16.msra.mxu0 0
  %1024 = vmatprep.mubr.bf16.mxu0 0
  %1025 = vmatmul.mubr.bf16.gmra.mrb[0].mxu0 %v308
  %v1026 = vpop.f32.mrb[0].mxu0
  %v1027 = vadd.f32 0.0, %v1026
  %v1028 = vpop.f32.mrb[0].mxu0
  %v1029 = vpop.f32.mrb[0].mxu0
  %v1030 = vadd.f32 0.0, %v1029
  %v1031 = vpop.f32.mrb[0].mxu0
  %1032 = vmatprep.mubr.bf16.mxu0 0
  %1033 = vmatmul.mubr.bf16.gmra.mrb[0].mxu0 %v311
  %v1034 = vpop.f32.mrb[0].mxu0
  %v1035 = vadd.f32 0.0, %v1034
  %v1036 = vpop.f32.mrb[0].mxu0
  %v1037 = vpop.f32.mrb[0].mxu0
  %v1038 = vadd.f32 0.0, %v1037
  %v1039 = vpop.f32.mrb[0].mxu0
  %1040 = vmatprep.mubr.bf16.mxu0 0
  %1041 = vmatmul.mubr.bf16.gmra.mrb[0].mxu0 %v314
  %v1042 = vpop.f32.mrb[0].mxu0
  %v1043 = vadd.f32 0.0, %v1042
  %v1044 = vpop.f32.mrb[0].mxu0
  %v1045 = vpop.f32.mrb[0].mxu0
  %v1046 = vadd.f32 0.0, %v1045
  %v1047 = vpop.f32.mrb[0].mxu0
  %1048 = vmatprep.mubr.bf16.mxu0 0
  %1049 = vmatmul.mubr.bf16.gmra.mrb[0].mxu0 %v317
  %v1050 = vpop.f32.mrb[0].mxu0
  %v1051 = vadd.f32 0.0, %v1050
  %v1052 = vpop.f32.mrb[0].mxu0
  %v1053 = vpop.f32.mrb[0].mxu0
  %v1054 = vadd.f32 0.0, %v1053
  %v1055 = vpop.f32.mrb[0].mxu0
  %1056 = vdwg.mxu0
  %v1057 = vsub.f32 0.0, %v1027
  %v1058 = vsub.f32 0.0, %v1030
  %v1059 = vsub.f32 0.0, %v1035
  %v1060 = vsub.f32 0.0, %v1038
  %v1061 = vpack.c.bf16 %v963, %v960
  %v1062 = vpack.c.bf16 %v971, %v968
  %v1063 = vpack.c.bf16 %v1058, %v1057
  %v1064 = vpack.c.bf16 %v1060, %v1059
  %v1065 = vpack.c.bf16 %v1030, %v1027
  %v1066 = vpack.c.bf16 %v1038, %v1035
  %1067 = vxpose.xlu0.c.b16.start [1/8] %v923, 128
  %1068 = vxpose.xlu0.c.b16.cont [2/8] %v924, 128
  %1069 = vxpose.xlu0.c.b16.cont [3/8] %v990, 128
  %1070 = vxpose.xlu0.c.b16.cont [4/8] %v991, 128
  %1071 = vxpose.xlu0.c.b16.cont [5/8] 0, 128
  %1072 = vxpose.xlu0.c.b16.cont [6/8] 0, 128
  %1073 = vxpose.xlu0.c.b16.cont [7/8] 0, 128
  %1074 = vxpose.xlu0.c.b16.end [8/8] 0, 128
  %v1075 = vpop.trf.xlu0
  %v1076 = vpop.trf.xlu0
  %v1077 = vpop.trf.xlu0
  %v1078 = vpop.trf.xlu0
  %v1079 = vpop.trf.xlu0
  %v1080 = vpop.trf.xlu0
  %v1081 = vpop.trf.xlu0
  %v1082 = vpop.trf.xlu0
  %v1084 = vsel %vm477, %v1075, 0
  %1086 = vmatprep.subr.bf16.mxu0 0
  %1087 = vmatpush1.bf16.msra.mxu0 %v1061
  %1088 = vmatprep.subr.bf16.mxu0 0
  %1089 = vmatpush1.bf16.msra.mxu0 %v1062
  %1090 = vmatprep.subr.bf16.mxu0 0
  %1091 = vmatpush1.bf16.msra.mxu0 %v1063
  %1092 = vmatprep.subr.bf16.mxu0 0
  %1093 = vmatpush1.bf16.msra.mxu0 %v1064
  %1094 = vmatprep.subr.bf16.mxu0 0
  %1095 = vmatpush1.bf16.msra.mxu0 0
  %1096 = vmatprep.subr.bf16.mxu0 0
  %1097 = vmatpush1.bf16.msra.mxu0 0
  %1098 = vmatprep.subr.bf16.mxu0 0
  %1099 = vmatpush1.bf16.msra.mxu0 0
  %1100 = vmatprep.subr.bf16.mxu0 0
  %1101 = vmatpush1.bf16.msra.mxu0 0
  %1102 = vmatprep.subr.bf16.mxu0 0
  %1103 = vmatpush1.bf16.msra.mxu0 0
  %1104 = vmatprep.subr.bf16.mxu0 0
  %1105 = vmatpush1.bf16.msra.mxu0 0
  %1106 = vmatprep.subr.bf16.mxu0 0
  %1107 = vmatpush1.bf16.msra.mxu0 0
  %1108 = vmatprep.subr.bf16.mxu0 0
  %1109 = vmatpush1.bf16.msra.mxu0 0
  %1110 = vmatprep.subr.bf16.mxu0 0
  %1111 = vmatpush1.bf16.msra.mxu0 0
  %1112 = vmatprep.subr.bf16.mxu0 0
  %1113 = vmatpush1.bf16.msra.mxu0 0
  %1114 = vmatprep.subr.bf16.mxu0 0
  %1115 = vmatpush1.bf16.msra.mxu0 0
  %1116 = vmatprep.subr.bf16.mxu0 0
  %1117 = vmatpush1.bf16.msra.mxu0 0
  %1118 = vmatprep.mubr.bf16.mxu0 0
  %1119 = vmatmul.mubr.bf16.gmra.mrb[0].mxu0 %v1084
  %v1120 = vpop.f32.mrb[0].mxu0
  %v1121 = vadd.f32 0.0, %v1120
  %v1122 = vpop.f32.mrb[0].mxu0
  %v1123 = vpop.f32.mrb[0].mxu0
  %v1124 = vadd.f32 0.0, %v1123
  %v1125 = vpop.f32.mrb[0].mxu0
  %1126 = vdwg.mxu0
  %v1127 = vmul.f32 %v1121, 0.17677669
  %v1128 = vmul.f32 %v1124, 0.17677669
  %1129 = vmatprep.subr.bf16.mxu0 0
  %1130 = vmatpush1.bf16.msra.mxu0 %v1065
  %1131 = vmatprep.subr.bf16.mxu0 0
  %1132 = vmatpush1.bf16.msra.mxu0 %v1066
  %1133 = vmatprep.subr.bf16.mxu0 0
  %1134 = vmatpush1.bf16.msra.mxu0 %v1061
  %1135 = vmatprep.subr.bf16.mxu0 0
  %1136 = vmatpush1.bf16.msra.mxu0 %v1062
  %1137 = vmatprep.subr.bf16.mxu0 0
  %1138 = vmatpush1.bf16.msra.mxu0 0
  %1139 = vmatprep.subr.bf16.mxu0 0
  %1140 = vmatpush1.bf16.msra.mxu0 0
  %1141 = vmatprep.subr.bf16.mxu0 0
  %1142 = vmatpush1.bf16.msra.mxu0 0
  %1143 = vmatprep.subr.bf16.mxu0 0
  %1144 = vmatpush1.bf16.msra.mxu0 0
  %1145 = vmatprep.subr.bf16.mxu0 0
  %1146 = vmatpush1.bf16.msra.mxu0 0
  %1147 = vmatprep.subr.bf16.mxu0 0
  %1148 = vmatpush1.bf16.msra.mxu0 0
  %1149 = vmatprep.subr.bf16.mxu0 0
  %1150 = vmatpush1.bf16.msra.mxu0 0
  %1151 = vmatprep.subr.bf16.mxu0 0
  %1152 = vmatpush1.bf16.msra.mxu0 0
  %1153 = vmatprep.subr.bf16.mxu0 0
  %1154 = vmatpush1.bf16.msra.mxu0 0
  %1155 = vmatprep.subr.bf16.mxu0 0
  %1156 = vmatpush1.bf16.msra.mxu0 0
  %1157 = vmatprep.subr.bf16.mxu0 0
  %1158 = vmatpush1.bf16.msra.mxu0 0
  %1159 = vmatprep.subr.bf16.mxu0 0
  %1160 = vmatpush1.bf16.msra.mxu0 0
  %1161 = vmatprep.mubr.bf16.mxu0 0
  %1162 = vmatmul.mubr.bf16.gmra.mrb[0].mxu0 %v1084
  %v1163 = vpop.f32.mrb[0].mxu0
  %v1164 = vadd.f32 0.0, %v1163
  %v1165 = vpop.f32.mrb[0].mxu0
  %v1166 = vpop.f32.mrb[0].mxu0
  %v1167 = vadd.f32 0.0, %v1166
  %v1168 = vpop.f32.mrb[0].mxu0
  %1169 = vdwg.mxu0
  %v1170 = vmul.f32 %v1164, 0.17677669
  %v1171 = vmul.f32 %v1167, 0.17677669
  %v1172 = vmul.f32 %v1127, %v1127
  %v1173 = vmul.f32 %v1128, %v1128
  %v1174 = vmul.f32 %v1170, %v1170
  %v1175 = vmul.f32 %v1171, %v1171
  %v1176 = vadd.f32 %v1172, %v1174
  %v1177 = vadd.f32 %v1173, %v1175
  %v1178 = vrsqrt.pop %v1176
  %v1179 = vmul.f32 %v1176, %v1178
  %vm1180 = vcmp.eq.f32.partialorder %v1176, inf
  %v1181 = vsel %vm1180, %v1176, %v1179
  %vm1182 = vcmp.eq.f32.partialorder %v1176, 0.0
  %v1183 = vand.u32 %v1176, 2147483648
  %v1184 = vsel %vm1182, %v1183, %v1181
  %v1185 = vrsqrt.pop %v1177
  %v1186 = vmul.f32 %v1177, %v1185
  %vm1187 = vcmp.eq.f32.partialorder %v1177, inf
  %v1188 = vsel %vm1187, %v1177, %v1186
  %vm1189 = vcmp.eq.f32.partialorder %v1177, 0.0
  %v1190 = vand.u32 %v1177, 2147483648
  %v1191 = vsel %vm1189, %v1190, %v1188
  %v1192 = vsel %vm587, %v1184, -inf
  %1193 = vmax.xlane.f32.xlu0 %v1192
  %v1194 = vpop.xlane.xlu0 %1193
  %v1195 = vsel %vm591, %v1191, -inf
  %1196 = vmax.xlane.f32.xlu0 %v1195
  %v1197 = vpop.xlane.xlu0 %1196
  %v1198 = vsub.f32 %v1184, %v1194
  %v1199 = vsub.f32 %v1191, %v1197
  %v1200 = vmul.f32 %v1198, 1.442695
  %v1201 = vpow.pop %v1200
  %v1202 = vmul.f32 %v1199, 1.442695
  %v1203 = vpow.pop %v1202
  %v1204 = vsel %vm587, %v1201, 0.0
  %1205 = vadd.xlane.f32.xlu0 %v1204
  %v1206 = vpop.xlane.xlu0 %1205
  %v1207 = vsel %vm591, %v1203, 0.0
  %1208 = vadd.xlane.f32.xlu0 %v1207
  %v1209 = vpop.xlane.xlu0 %1208
  %v1210 = vrcp.pop %v1206
  %v1211 = vrcp.pop %v1209
  %v1212 = vmul.f32 %v1201, %v1210
  %v1213 = vmul.f32 %v1203, %v1211
  %v1214 = vpack.c.bf16 %v979, %v976
  %v1215 = vpack.c.bf16 %v987, %v984
  %v1216 = vpack.c.bf16 %v1046, %v1043
  %v1217 = vpack.c.bf16 %v1054, %v1051
  %v1218 = vpack.c.bf16 %v1213, %v1212
  %v1220 = vsel %vm587, %v1214, 0
  %v1223 = vsel %vm587, %v1215, 0
  %v1226 = vsel %vm587, %v1216, 0
  %v1229 = vsel %vm587, %v1217, 0
  %v1232 = vsel %vm587, %v1218, 0
  %1234 = vmatprep.subr.bf16.mxu0 0
  %1235 = vmatpush1.bf16.xpose.msra.mxu0 %v1232
  %1236 = vmatprep.subr.bf16.mxu0 0
  %1237 = vmatpush1.bf16.xpose.msra.mxu0 0
  %1238 = vmatprep.subr.bf16.mxu0 0
  %1239 = vmatpush1.bf16.xpose.msra.mxu0 0
  %1240 = vmatprep.subr.bf16.mxu0 0
  %1241 = vmatpush1.bf16.xpose.msra.mxu0 0
  %1242 = vmatprep.subr.bf16.mxu0 0
  %1243 = vmatpush1.bf16.xpose.msra.mxu0 0
  %1244 = vmatprep.subr.bf16.mxu0 0
  %1245 = vmatpush1.bf16.xpose.msra.mxu0 0
  %1246 = vmatprep.subr.bf16.mxu0 0
  %1247 = vmatpush1.bf16.xpose.msra.mxu0 0
  %1248 = vmatprep.subr.bf16.mxu0 0
  %1249 = vmatpush1.bf16.xpose.msra.mxu0 0
  %1250 = vmatprep.subr.bf16.mxu0 0
  %1251 = vmatpush1.bf16.xpose.msra.mxu0 0
  %1252 = vmatprep.subr.bf16.mxu0 0
  %1253 = vmatpush1.bf16.xpose.msra.mxu0 0
  %1254 = vmatprep.subr.bf16.mxu0 0
  %1255 = vmatpush1.bf16.xpose.msra.mxu0 0
  %1256 = vmatprep.subr.bf16.mxu0 0
  %1257 = vmatpush1.bf16.xpose.msra.mxu0 0
  %1258 = vmatprep.subr.bf16.mxu0 0
  %1259 = vmatpush1.bf16.xpose.msra.mxu0 0
  %1260 = vmatprep.subr.bf16.mxu0 0
  %1261 = vmatpush1.bf16.xpose.msra.mxu0 0
  %1262 = vmatprep.subr.bf16.mxu0 0
  %1263 = vmatpush1.bf16.xpose.msra.mxu0 0
  %1264 = vmatprep.subr.bf16.mxu0 0
  %1265 = vmatpush1.bf16.xpose.msra.mxu0 0
  %1266 = vmatprep.mubr.bf16.mxu0 0
  %1267 = vmatmul.mubr.bf16.gmra.mrb[0].mxu0 %v1220
  %v1268 = vpop.f32.mrb[0].mxu0
  %v1269 = vadd.f32 0.0, %v1268
  %v1270 = vpop.f32.mrb[0].mxu0
  %v1271 = vpop.f32.mrb[0].mxu0
  %v1272 = vadd.f32 0.0, %v1271
  %v1273 = vpop.f32.mrb[0].mxu0
  %1274 = vmatprep.mubr.bf16.mxu0 0
  %1275 = vmatmul.mubr.bf16.gmra.mrb[0].mxu0 %v1223
  %v1276 = vpop.f32.mrb[0].mxu0
  %v1277 = vadd.f32 0.0, %v1276
  %v1278 = vpop.f32.mrb[0].mxu0
  %v1279 = vpop.f32.mrb[0].mxu0
  %v1280 = vadd.f32 0.0, %v1279
  %v1281 = vpop.f32.mrb[0].mxu0
  %1282 = vmatprep.mubr.bf16.mxu0 0
  %1283 = vmatmul.mubr.bf16.gmra.mrb[0].mxu0 %v1226
  %v1284 = vpop.f32.mrb[0].mxu0
  %v1285 = vadd.f32 0.0, %v1284
  %v1286 = vpop.f32.mrb[0].mxu0
  %v1287 = vpop.f32.mrb[0].mxu0
  %v1288 = vadd.f32 0.0, %v1287
  %v1289 = vpop.f32.mrb[0].mxu0
  %1290 = vmatprep.mubr.bf16.mxu0 0
  %1291 = vmatmul.mubr.bf16.gmra.mrb[0].mxu0 %v1229
  %v1292 = vpop.f32.mrb[0].mxu0
  %v1293 = vadd.f32 0.0, %v1292
  %v1294 = vpop.f32.mrb[0].mxu0
  %v1295 = vpop.f32.mrb[0].mxu0
  %v1296 = vadd.f32 0.0, %v1295
  %v1297 = vpop.f32.mrb[0].mxu0
  %1298 = vdwg.mxu0
  %s1299 = scalar_lea.vmem %s6, 1
  %v1300 = vld [vmem:[%s1299] sm:$0x1]
  %vm1301 = vcmp.gt.f32.partialorder %v1300, %v697
  %v1302 = vsel %vm1301, 1, 0
  %v1303 = vcvt.s32.f32 %v1302
  %v1305 = vlaneseq
  %v1306 = vshrl.u32 %v1305, 7
  %v1307 = vsub.s32 0, %v1306
  %v1308 = vrot.slane %v1303, %v1307
  %v1310 = vmul.f32 %v144, %v1308
  %v1311 = vmul.f32 %v147, %v1308
  %v1312 = vmul.f32 %v152, %v1308
  %v1313 = vmul.f32 %v155, %v1308
  %v1314 = vmul.f32 %v217, %v1308
  %v1315 = vmul.f32 %v220, %v1308
  %v1316 = vmul.f32 %v225, %v1308
  %v1317 = vmul.f32 %v228, %v1308
  %v1318 = vmul.f32 %v1310, %v718
  %v1319 = vmul.f32 %v1311, %v723
  %v1320 = vmul.f32 %v1312, %v728
  %v1321 = vmul.f32 %v1313, %v733
  %v1322 = vadd.f32 %v1269, %v1318
  %v1323 = vadd.f32 %v1272, %v1319
  %v1324 = vadd.f32 %v1277, %v1320
  %v1325 = vadd.f32 %v1280, %v1321
  %v1326 = vmul.f32 %v1314, %v745
  %v1327 = vmul.f32 %v1315, %v749
  %v1328 = vmul.f32 %v1316, %v753
  %v1329 = vmul.f32 %v1317, %v757
  %v1330 = vsub.f32 %v1322, %v1326
  %v1331 = vsub.f32 %v1323, %v1327
  %v1332 = vsub.f32 %v1324, %v1328
  %v1333 = vsub.f32 %v1325, %v1329
  %v1334 = vmul.f32 %v1310, %v745
  %v1335 = vmul.f32 %v1311, %v749
  %v1336 = vmul.f32 %v1312, %v753
  %v1337 = vmul.f32 %v1313, %v757
  %v1338 = vadd.f32 %v1285, %v1334
  %v1339 = vadd.f32 %v1288, %v1335
  %v1340 = vadd.f32 %v1293, %v1336
  %v1341 = vadd.f32 %v1296, %v1337
  %v1342 = vmul.f32 %v1314, %v718
  %v1343 = vmul.f32 %v1315, %v723
  %v1344 = vmul.f32 %v1316, %v728
  %v1345 = vmul.f32 %v1317, %v733
  %v1346 = vadd.f32 %v1338, %v1342
  %v1347 = vadd.f32 %v1339, %v1343
  %v1348 = vadd.f32 %v1340, %v1344
  %v1349 = vadd.f32 %v1341, %v1345
  %v1350 = vmul.f32 %v1330, %v787
  %v1351 = vmul.f32 %v1331, %v787
  %v1352 = vmul.f32 %v1332, %v787
  %v1353 = vmul.f32 %v1333, %v787
  %v1354 = vpack.c.bf16 %v1351, %v1350
  %v1355 = vpack.c.bf16 %v1353, %v1352
  %v1356 = vmul.f32 %v1346, %v787
  %v1357 = vmul.f32 %v1347, %v787
  %v1358 = vmul.f32 %v1348, %v787
  %v1359 = vmul.f32 %v1349, %v787
  %v1360 = vpack.c.bf16 %v1357, %v1356
  %v1361 = vpack.c.bf16 %v1359, %v1358
  %v1363 = vsel %vm587, %v1360, 0
  %v1366 = vsel %vm587, %v1361, 0
  %1368 = vmatprep.subr.bf16.mxu0 0
  %1369 = vmatpush1.bf16.msra.mxu0 %v811
  %1370 = vmatprep.subr.bf16.mxu0 0
  %1371 = vmatpush1.bf16.msra.mxu0 0
  %1372 = vmatprep.subr.bf16.mxu0 0
  %1373 = vmatpush1.bf16.msra.mxu0 0
  %1374 = vmatprep.subr.bf16.mxu0 0
  %1375 = vmatpush1.bf16.msra.mxu0 0
  %1376 = vmatprep.subr.bf16.mxu0 0
  %1377 = vmatpush1.bf16.msra.mxu0 0
  %1378 = vmatprep.subr.bf16.mxu0 0
  %1379 = vmatpush1.bf16.msra.mxu0 0
  %1380 = vmatprep.subr.bf16.mxu0 0
  %1381 = vmatpush1.bf16.msra.mxu0 0
  %1382 = vmatprep.subr.bf16.mxu0 0
  %1383 = vmatpush1.bf16.msra.mxu0 0
  %1384 = vmatprep.subr.bf16.mxu0 0
  %1385 = vmatpush1.bf16.msra.mxu0 0
  %1386 = vmatprep.subr.bf16.mxu0 0
  %1387 = vmatpush1.bf16.msra.mxu0 0
  %1388 = vmatprep.subr.bf16.mxu0 0
  %1389 = vmatpush1.bf16.msra.mxu0 0
  %1390 = vmatprep.subr.bf16.mxu0 0
  %1391 = vmatpush1.bf16.msra.mxu0 0
  %1392 = vmatprep.subr.bf16.mxu0 0
  %1393 = vmatpush1.bf16.msra.mxu0 0
  %1394 = vmatprep.subr.bf16.mxu0 0
  %1395 = vmatpush1.bf16.msra.mxu0 0
  %1396 = vmatprep.subr.bf16.mxu0 0
  %1397 = vmatpush1.bf16.msra.mxu0 0
  %1398 = vmatprep.subr.bf16.mxu0 0
  %1399 = vmatpush1.bf16.msra.mxu0 0
  %1400 = vmatprep.mubr.bf16.mxu0 0
  %1401 = vmatmul.mubr.bf16.gmra.mrb[0].mxu0 %v1363
  %v1402 = vpop.f32.mrb[0].mxu0
  %v1403 = vadd.f32 0.0, %v1402
  %v1404 = vpop.f32.mrb[0].mxu0
  %v1405 = vpop.f32.mrb[0].mxu0
  %v1406 = vadd.f32 0.0, %v1405
  %v1407 = vpop.f32.mrb[0].mxu0
  %1408 = vmatprep.mubr.bf16.mxu0 0
  %1409 = vmatmul.mubr.bf16.gmra.mrb[0].mxu0 %v1366
  %v1410 = vpop.f32.mrb[0].mxu0
  %v1411 = vadd.f32 0.0, %v1410
  %v1412 = vpop.f32.mrb[0].mxu0
  %v1413 = vpop.f32.mrb[0].mxu0
  %v1414 = vadd.f32 0.0, %v1413
  %v1415 = vpop.f32.mrb[0].mxu0
  %1416 = vdwg.mxu0
  %v1418 = vsel %vm587, %v1354, 0
  %v1421 = vsel %vm587, %v1355, 0
  %1423 = vmatprep.subr.bf16.mxu0 0
  %1424 = vmatpush1.bf16.msra.mxu0 %v868
  %1425 = vmatprep.subr.bf16.mxu0 0
  %1426 = vmatpush1.bf16.msra.mxu0 0
  %1427 = vmatprep.subr.bf16.mxu0 0
  %1428 = vmatpush1.bf16.msra.mxu0 0
  %1429 = vmatprep.subr.bf16.mxu0 0
  %1430 = vmatpush1.bf16.msra.mxu0 0
  %1431 = vmatprep.subr.bf16.mxu0 0
  %1432 = vmatpush1.bf16.msra.mxu0 0
  %1433 = vmatprep.subr.bf16.mxu0 0
  %1434 = vmatpush1.bf16.msra.mxu0 0
  %1435 = vmatprep.subr.bf16.mxu0 0
  %1436 = vmatpush1.bf16.msra.mxu0 0
  %1437 = vmatprep.subr.bf16.mxu0 0
  %1438 = vmatpush1.bf16.msra.mxu0 0
  %1439 = vmatprep.subr.bf16.mxu0 0
  %1440 = vmatpush1.bf16.msra.mxu0 0
  %1441 = vmatprep.subr.bf16.mxu0 0
  %1442 = vmatpush1.bf16.msra.mxu0 0
  %1443 = vmatprep.subr.bf16.mxu0 0
  %1444 = vmatpush1.bf16.msra.mxu0 0
  %1445 = vmatprep.subr.bf16.mxu0 0
  %1446 = vmatpush1.bf16.msra.mxu0 0
  %1447 = vmatprep.subr.bf16.mxu0 0
  %1448 = vmatpush1.bf16.msra.mxu0 0
  %1449 = vmatprep.subr.bf16.mxu0 0
  %1450 = vmatpush1.bf16.msra.mxu0 0
  %1451 = vmatprep.subr.bf16.mxu0 0
  %1452 = vmatpush1.bf16.msra.mxu0 0
  %1453 = vmatprep.subr.bf16.mxu0 0
  %1454 = vmatpush1.bf16.msra.mxu0 0
  %1455 = vmatprep.mubr.bf16.mxu0 0
  %1456 = vmatmul.mubr.bf16.gmra.mrb[0].mxu0 %v1418
  %v1457 = vpop.f32.mrb[0].mxu0
  %v1458 = vadd.f32 %v1403, %v1457
  %v1459 = vpop.f32.mrb[0].mxu0
  %v1460 = vpop.f32.mrb[0].mxu0
  %v1461 = vadd.f32 %v1406, %v1460
  %v1462 = vpop.f32.mrb[0].mxu0
  %1463 = vmatprep.mubr.bf16.mxu0 0
  %1464 = vmatmul.mubr.bf16.gmra.mrb[0].mxu0 %v1421
  %v1465 = vpop.f32.mrb[0].mxu0
  %v1466 = vadd.f32 %v1411, %v1465
  %v1467 = vpop.f32.mrb[0].mxu0
  %v1468 = vpop.f32.mrb[0].mxu0
  %v1469 = vadd.f32 %v1414, %v1468
  %v1470 = vpop.f32.mrb[0].mxu0
  %1471 = vdwg.mxu0
  %s1472 = scalar_lea.vmem %s9, 32
  %1473 = vst.msk [vmem:[%s1472] sm:$0xff] %vm77, %v1458
  %1474 = vst.msk [vmem:[%s1472 + $0x8] sm:$0xff] %vm77, %v1461
  %1475 = vst.msk [vmem:[%s1472 + $0x10] sm:$0xff] %vm77, %v1466
  %1476 = vst.msk [vmem:[%s1472 + $0x18] sm:$0xff] %vm77, %v1469
  // Predicated region
  $region38: #{adaptive_spectral_block_t.3} parent=0 // pred_check
    _
  $region39: #{adaptive_spectral_block_t.3} parent=0 // pred_check_branch
    %1478 = sbr.rel (0) target = $region41
  $region40: #{adaptive_spectral_block_t.3} parent=0 // pred_region
    _
  $region41: #{adaptive_spectral_block_t.3} parent=0 // pred_fallthru
    _
  // Predicated region
  $region42: #{adaptive_spectral_block_t.3} parent=0 // pred_check
    _
  $region43: #{adaptive_spectral_block_t.3} parent=0 // pred_check_branch
    %1480 = sbr.rel (0) target = $region45
  $region44: #{adaptive_spectral_block_t.3} parent=0 // pred_region
    _
  $region45: #{adaptive_spectral_block_t.3} parent=0 // pred_fallthru
    _

</llo_original>
